<compile_context>
chip_gen: v6e
topology: v6e:2x2x1
jax: 0.10.0
libtpu: 0.0.40
codegen_flags: <defaults>
</compile_context>

<pallas_src>
import numpy as np
import jax
import jax.numpy as jnp
from jax import lax
from jax.experimental import pallas as pl
from jax.experimental.pallas import tpu as pltpu

# ---- config (mirrors the `config` object used by the PyTorch module) ----
VOCAB_SIZE = 50
EMB_SIZE = 32
NUM_FILTERS = 8
NUM_CLASSES = 4
WINDOW_SIZES = (3, 4, 5)
N_WIN = len(WINDOW_SIZES)
MAX_WS = max(WINDOW_SIZES)
MAX_PAD = MAX_WS - 1
F_TOT = NUM_FILTERS * N_WIN          # fused filter-bank width (24)
VOCAB_PAD = 128                      # vocab padded to a full lane tile for the one-hot matmul
OUT_LANES = 8                        # packed output: [probs(4) | class(1) | zero pad(3)]
B_TILE = 256                         # batch rows per grid step (fits default scoped VMEM on
                                     # all generations; can be raised on v5e/v6e with
                                     # vmem_limit_bytes for slightly better amortization)


def _round_up(x, m):
    return ((x + m - 1) // m) * m


def _cnn_kernel(tok_ref,       # [Bt, L]             int32  (per-tile DMA)
                emb_ref,       # [VOCAB_PAD, E]      f32    (resident)
                w_ref,         # [MAX_WS, E, F_TOT]  f32    fused, left-zero-padded taps (resident)
                b_ref,         # [1, F_TOT]          f32    (resident)
                mask_ref,      # [Lout, F_TOT]       f32    1.0 on valid conv positions (resident)
                fcw_ref,       # [F_TOT, C]          f32    (resident, reordered to fused layout)
                fcb_ref,       # [1, C]              f32    (resident)
                out_ref,       # [Bt, OUT_LANES]     f32    packed output
                xpad_ref):     # VMEM scratch [Bt, L + 2*MAX_PAD, E]
    Bt, L = tok_ref.shape
    V, E = emb_ref.shape
    C = fcw_ref.shape[1]
    Lout = L + MAX_WS - 1

    # ---- embedding gather in-kernel via one-hot matmul on the MXU (bounds-safe) ----
    tok = tok_ref[...]                                                   # [Bt, L] i32
    onehot = (tok[:, :, None] ==
              lax.broadcasted_iota(jnp.int32, (Bt, L, V), 2)).astype(jnp.float32)
    x = jnp.einsum('blv,ve->ble', onehot, emb_ref[...],
                   preferred_element_type=jnp.float32)                   # [Bt, L, E]

    # ---- zero-padded sequence buffer in VMEM scratch; taps slice the ref directly ----
    xpad_ref[:, 0:MAX_PAD, :] = jnp.zeros((Bt, MAX_PAD, E), jnp.float32)
    xpad_ref[:, MAX_PAD + L:2 * MAX_PAD + L, :] = jnp.zeros((Bt, MAX_PAD, E), jnp.float32)
    xpad_ref[:, MAX_PAD:MAX_PAD + L, :] = x

    # ---- fused 3-window conv as ONE 5-tap, 24-filter bank ----
    w = w_ref[...]                                                       # [5, E, F_TOT]
    acc = None
    for k in range(MAX_WS):                                              # static unroll
        xk = xpad_ref[:, k:k + Lout, :]                                  # [Bt, Lout, E]
        t = jnp.einsum('ble,ef->blf', xk, w[k],
                       preferred_element_type=jnp.float32)               # [Bt, Lout, F_TOT]
        acc = t if acc is None else acc + t

    conv = jnp.maximum(acc + b_ref[...][None, :, :], 0.0)                # bias + ReLU
    # zero the per-window invalid trailing positions (safe: ReLU output >= 0, so a masked
    # zero can never win the max-pool over the valid positions)
    conv = conv * mask_ref[...][None, :, :]
    pooled = jnp.max(conv, axis=1)                                       # [Bt, F_TOT]

    # ---- FC + softmax + argmax ----
    logits = jnp.dot(pooled, fcw_ref[...],
                     preferred_element_type=jnp.float32) + fcb_ref[...]  # [Bt, C]
    m = jnp.max(logits, axis=1, keepdims=True)
    e = jnp.exp(logits - m)
    # approx=False keeps the 1e-5 match against the pure-JAX reference
    probs = e * pl.reciprocal(jnp.sum(e, axis=1, keepdims=True), approx=False)

    idx = lax.broadcasted_iota(jnp.int32, (Bt, C), 1)
    is_max = probs >= jnp.max(probs, axis=1, keepdims=True)
    cls = jnp.min(jnp.where(is_max, idx, C), axis=1, keepdims=True).astype(jnp.float32)

    # single packed lane-contiguous store: [probs | class | zero pad]
    out_ref[...] = jnp.concatenate(
        [probs, cls, jnp.zeros((Bt, OUT_LANES - C - 1), jnp.float32)], axis=1)


def init_params(key):
    ks = jax.random.split(key, 2 + 2 * N_WIN)
    params = {
        'emb': jax.random.normal(ks[0], (VOCAB_SIZE, EMB_SIZE), jnp.float32) * 0.1,
        'fc_w': jax.random.normal(ks[1], (NUM_FILTERS * N_WIN, NUM_CLASSES), jnp.float32) * 0.1,
        'fc_b': jnp.linspace(-0.1, 0.1, NUM_CLASSES, dtype=jnp.float32),
    }
    for i, ws in enumerate(WINDOW_SIZES):
        params[f'conv_w{ws}'] = jax.random.normal(ks[2 + 2 * i], (ws, EMB_SIZE, NUM_FILTERS),
                                                  jnp.float32) * 0.1
        params[f'conv_b{ws}'] = jax.random.normal(ks[3 + 2 * i], (NUM_FILTERS,), jnp.float32) * 0.1
    return params


@jax.jit
def cnn_text_classifier(tokens, params):
    tokens = tokens.astype(jnp.int32)
    B, L = tokens.shape
    Lout = L + MAX_WS - 1
    E, F, C = EMB_SIZE, NUM_FILTERS, NUM_CLASSES

    # --- batch tiling: grid over batch, weights resident via constant index maps ---
    bt = min(B_TILE, _round_up(B, 8))
    Bp = _round_up(B, bt)
    tokens_p = jnp.pad(tokens, ((0, Bp - B), (0, 0)))

    # --- build the fused, left-zero-padded 5-tap filter bank (trace-time plumbing) ---
    emb_pad = jnp.zeros((VOCAB_PAD, E), jnp.float32).at[:VOCAB_SIZE].set(params['emb'])
    w_fused = jnp.zeros((MAX_WS, E, F_TOT), jnp.float32)
    for wi, ws in enumerate(WINDOW_SIZES):
        w_fused = w_fused.at[MAX_WS - ws:, :, wi * F:(wi + 1) * F].set(params[f'conv_w{ws}'])
    b_fused = jnp.concatenate([params[f'conv_b{ws}'] for ws in WINDOW_SIZES]).reshape(1, F_TOT)

    # conv output position t is valid for window ws iff t < L + ws - 1 (left-padded taps)
    valid_len = np.repeat(np.array([L + ws - 1 for ws in WINDOW_SIZES], np.int32), F)
    mask = jnp.asarray((np.arange(Lout)[:, None] < valid_len[None, :]).astype(np.float32))

    # fc weight rows: torch cat(...,2).view(B,-1) flatten order is f*N_WIN + w;
    # the fused pooled feature order is w*F + f -> reorder rows accordingly.
    perm = np.array([f * N_WIN + wi for wi in range(N_WIN) for f in range(F)])
    fcw_fused = params['fc_w'][perm, :]                                   # [F_TOT, C]
    fcb = params['fc_b'].reshape(1, C)

    out = pl.pallas_call(
        _cnn_kernel,
        grid=(Bp // bt,),
        in_specs=[
            pl.BlockSpec((bt, L), lambda i: (i, 0)),                      # tokens (tiled)
            pl.BlockSpec((VOCAB_PAD, E), lambda i: (0, 0)),               # embedding table
            pl.BlockSpec((MAX_WS, E, F_TOT), lambda i: (0, 0, 0)),        # fused conv weights
            pl.BlockSpec((1, F_TOT), lambda i: (0, 0)),                   # fused conv bias
            pl.BlockSpec((Lout, F_TOT), lambda i: (0, 0)),                # validity mask
            pl.BlockSpec((F_TOT, C), lambda i: (0, 0)),                   # fc weight (reordered)
            pl.BlockSpec((1, C), lambda i: (0, 0)),                       # fc bias
        ],
        out_specs=pl.BlockSpec((bt, OUT_LANES), lambda i: (i, 0)),
        out_shape=jax.ShapeDtypeStruct((Bp, OUT_LANES), jnp.float32),
        scratch_shapes=[pltpu.VMEM((bt, L + 2 * MAX_PAD, E), jnp.float32)],
        compiler_params=pltpu.CompilerParams(
            dimension_semantics=("parallel",)),                           # megacore on v7x
    )(tokens_p, emb_pad, w_fused, b_fused, mask, fcw_fused, fcb)

    probs = out[:B, :C]
    classes = out[:B, C].astype(jnp.int32)
    return probs, classes


def reference_forward(tokens, params):
    """Pure-JAX reference using lax.conv (independent path) for verification."""
    emb = jnp.take(params['emb'], tokens, axis=0)                         # [B, L, E]
    x4 = emb[:, None, :, :]                                               # NCHW: [B, 1, L, E]
    pooled = []
    for ws in WINDOW_SIZES:
        w = jnp.transpose(params[f'conv_w{ws}'], (2, 0, 1))[:, None, :, :]  # OIHW [F,1,ws,E]
        out = lax.conv_general_dilated(x4, w, (1, 1),
                                       padding=((ws - 1, ws - 1), (0, 0)),
                                       dimension_numbers=('NCHW', 'OIHW', 'NCHW'))
        out = jax.nn.relu(out[..., 0] + params[f'conv_b{ws}'][None, :, None])  # [B,F,Lout]
        pooled.append(jnp.max(out, axis=2, keepdims=True))                # [B, F, 1]
    feat = jnp.concatenate(pooled, axis=2).reshape(tokens.shape[0], -1)   # [B, F*N_WIN]
    logits = feat @ params['fc_w'] + params['fc_b']
    probs = jax.nn.softmax(logits, axis=1)
    return probs, jnp.argmax(probs, axis=1).astype(jnp.int32)


if __name__ == "__main__":
    key = jax.random.PRNGKey(0)
    k_tok, k_par = jax.random.split(key)
    B, L = 2, 8
    tokens = jax.random.randint(k_tok, (B, L), 0, VOCAB_SIZE, dtype=jnp.int32)
    params = init_params(k_par)

    probs, classes = cnn_text_classifier(tokens, params)
    jax.block_until_ready((probs, classes))

    ref_probs, ref_classes = reference_forward(tokens, params)
    assert probs.shape == (B, NUM_CLASSES) and classes.shape == (B,)
    assert jnp.allclose(probs, ref_probs, atol=1e-5, rtol=1e-5)
    assert bool(jnp.all(classes == ref_classes))
    print("KERNEL_OK")
</pallas_src>

<mosaic_0001>
module attributes {stable_mosaic.version = 11 : i64} {
  func.func @_cnn_kernel(%arg0: i32, %arg1: memref<8x8xi32, #tpu.memory_space<vmem>>, %arg2: memref<128x32xf32, #tpu.memory_space<vmem>>, %arg3: memref<5x32x24xf32, #tpu.memory_space<vmem>>, %arg4: memref<1x24xf32, #tpu.memory_space<vmem>>, %arg5: memref<12x24xf32, #tpu.memory_space<vmem>>, %arg6: memref<24x4xf32, #tpu.memory_space<vmem>>, %arg7: memref<1x4xf32, #tpu.memory_space<vmem>>, %arg8: memref<8x8xf32, #tpu.memory_space<vmem>>, %arg9: memref<8x16x32xf32, #tpu.memory_space<vmem>>) attributes {dimension_semantics = [#tpu.dimension_semantics<parallel>], iteration_bounds = array<i64: 1>, scalar_prefetch = 0 : i64, scratch_operands = 1 : i64, tpu.core_type = #tpu.core_type<tc>, window_params = [{transform_indices = @transform_0, window_bounds = array<i64: 8, 8>}, {pipeline_mode = #tpu.pipeline_mode<synchronous>, transform_indices = @transform_1, window_bounds = array<i64: 128, 32>}, {pipeline_mode = #tpu.pipeline_mode<synchronous>, transform_indices = @transform_2, window_bounds = array<i64: 5, 32, 24>}, {pipeline_mode = #tpu.pipeline_mode<synchronous>, transform_indices = @transform_3, window_bounds = array<i64: 1, 24>}, {pipeline_mode = #tpu.pipeline_mode<synchronous>, transform_indices = @transform_4, window_bounds = array<i64: 12, 24>}, {pipeline_mode = #tpu.pipeline_mode<synchronous>, transform_indices = @transform_5, window_bounds = array<i64: 24, 4>}, {pipeline_mode = #tpu.pipeline_mode<synchronous>, transform_indices = @transform_6, window_bounds = array<i64: 1, 4>}, {transform_indices = @transform_7, window_bounds = array<i64: 8, 8>}]} {
    %c0 = arith.constant 0 : index
    %c0_0 = arith.constant 0 : index
    %0 = vector.load %arg1[%c0, %c0_0] : memref<8x8xi32, #tpu.memory_space<vmem>>, vector<8x8xi32>
    %1 = vector.shape_cast %0 : vector<8x8xi32> to vector<8x8x1xi32>
    %2 = tpu.iota {dimensions = array<i32: 2>} : vector<8x8x128xi32>
    %3 = vector.broadcast %1 : vector<8x8x1xi32> to vector<8x8x128xi32>
    %4 = arith.cmpi eq, %3, %2 : vector<8x8x128xi32>
    %5 = arith.extui %4 : vector<8x8x128xi1> to vector<8x8x128xi32>
    %6 = arith.sitofp %5 : vector<8x8x128xi32> to vector<8x8x128xf32>
    %c0_1 = arith.constant 0 : index
    %c0_2 = arith.constant 0 : index
    %7 = vector.load %arg2[%c0_1, %c0_2] : memref<128x32xf32, #tpu.memory_space<vmem>>, vector<128x32xf32>
    "tpu.trace_start"() <{level = 10 : i32, message = "blv,ve->ble"}> : () -> ()
    %cst = arith.constant dense<0.000000e+00> : vector<8x8x32xf32>
    %8 = tpu.matmul %6, %7, %cst {dimension_numbers = #tpu.dot_dimension_numbers<[2], [0], [0, 1], [1], [0, 0, 0, 1, 1, 1], [], []>} : vector<8x8x128xf32>, vector<128x32xf32>, vector<8x8x32xf32> -> vector<8x8x32xf32>
    %cst_3 = arith.constant 0.000000e+00 : f32
    "tpu.trace_stop"() : () -> ()
    %9 = vector.broadcast %cst_3 : f32 to vector<8x4x32xf32>
    %c0_4 = arith.constant 0 : index
    %c0_5 = arith.constant 0 : index
    %c0_6 = arith.constant 0 : index
    %10 = vector.load %arg9[%c0_4, %c0_5, %c0_6] : memref<8x16x32xf32, #tpu.memory_space<vmem>>, vector<8x4x32xf32>
    tpu.vector_store %arg9[%c0_4, %c0_5, %c0_6], %9 {strides = array<i32>} : memref<8x16x32xf32, #tpu.memory_space<vmem>>, vector<8x4x32xf32>,
    %cst_7 = arith.constant 0.000000e+00 : f32
    %11 = vector.broadcast %cst_7 : f32 to vector<8x4x32xf32>
    %c0_8 = arith.constant 0 : index
    %c12 = arith.constant 12 : index
    %c0_9 = arith.constant 0 : index
    %12 = vector.load %arg9[%c0_8, %c12, %c0_9] : memref<8x16x32xf32, #tpu.memory_space<vmem>>, vector<8x4x32xf32>
    tpu.vector_store %arg9[%c0_8, %c12, %c0_9], %11 {strides = array<i32>} : memref<8x16x32xf32, #tpu.memory_space<vmem>>, vector<8x4x32xf32>,
    %c0_10 = arith.constant 0 : index
    %c4 = arith.constant 4 : index
    %c0_11 = arith.constant 0 : index
    %13 = vector.load %arg9[%c0_10, %c4, %c0_11] : memref<8x16x32xf32, #tpu.memory_space<vmem>>, vector<8x8x32xf32>
    tpu.vector_store %arg9[%c0_10, %c4, %c0_11], %8 {strides = array<i32>} : memref<8x16x32xf32, #tpu.memory_space<vmem>>, vector<8x8x32xf32>,
    %c0_12 = arith.constant 0 : index
    %c0_13 = arith.constant 0 : index
    %c0_14 = arith.constant 0 : index
    %14 = vector.load %arg3[%c0_12, %c0_13, %c0_14] : memref<5x32x24xf32, #tpu.memory_space<vmem>>, vector<5x32x24xf32>
    %c0_15 = arith.constant 0 : index
    %c0_16 = arith.constant 0 : index
    %c0_17 = arith.constant 0 : index
    %15 = vector.load %arg9[%c0_15, %c0_16, %c0_17] : memref<8x16x32xf32, #tpu.memory_space<vmem>>, vector<8x12x32xf32>
    %16 = vector.extract_strided_slice %14 {offsets = [0, 0, 0], sizes = [1, 32, 24], strides = [1, 1, 1]} : vector<5x32x24xf32> to vector<1x32x24xf32>
    %17 = vector.shape_cast %16 : vector<1x32x24xf32> to vector<32x24xf32>
    "tpu.trace_start"() <{level = 10 : i32, message = "ble,ef->blf"}> : () -> ()
    %cst_18 = arith.constant dense<0.000000e+00> : vector<8x12x24xf32>
    %18 = tpu.matmul %15, %17, %cst_18 {dimension_numbers = #tpu.dot_dimension_numbers<[2], [0], [0, 1], [1], [0, 0, 0, 1, 1, 1], [], []>} : vector<8x12x32xf32>, vector<32x24xf32>, vector<8x12x24xf32> -> vector<8x12x24xf32>
    "tpu.trace_stop"() : () -> ()
    %c0_19 = arith.constant 0 : index
    %c1 = arith.constant 1 : index
    %c0_20 = arith.constant 0 : index
    %19 = vector.load %arg9[%c0_19, %c1, %c0_20] : memref<8x16x32xf32, #tpu.memory_space<vmem>>, vector<8x12x32xf32>
    %20 = vector.extract_strided_slice %14 {offsets = [1, 0, 0], sizes = [1, 32, 24], strides = [1, 1, 1]} : vector<5x32x24xf32> to vector<1x32x24xf32>
    %21 = vector.shape_cast %20 : vector<1x32x24xf32> to vector<32x24xf32>
    "tpu.trace_start"() <{level = 10 : i32, message = "ble,ef->blf"}> : () -> ()
    %cst_21 = arith.constant dense<0.000000e+00> : vector<8x12x24xf32>
    %22 = tpu.matmul %19, %21, %cst_21 {dimension_numbers = #tpu.dot_dimension_numbers<[2], [0], [0, 1], [1], [0, 0, 0, 1, 1, 1], [], []>} : vector<8x12x32xf32>, vector<32x24xf32>, vector<8x12x24xf32> -> vector<8x12x24xf32>
    "tpu.trace_stop"() : () -> ()
    %23 = arith.addf %18, %22 : vector<8x12x24xf32>
    %c0_22 = arith.constant 0 : index
    %c2 = arith.constant 2 : index
    %c0_23 = arith.constant 0 : index
    %24 = vector.load %arg9[%c0_22, %c2, %c0_23] : memref<8x16x32xf32, #tpu.memory_space<vmem>>, vector<8x12x32xf32>
    %25 = vector.extract_strided_slice %14 {offsets = [2, 0, 0], sizes = [1, 32, 24], strides = [1, 1, 1]} : vector<5x32x24xf32> to vector<1x32x24xf32>
    %26 = vector.shape_cast %25 : vector<1x32x24xf32> to vector<32x24xf32>
    "tpu.trace_start"() <{level = 10 : i32, message = "ble,ef->blf"}> : () -> ()
    %cst_24 = arith.constant dense<0.000000e+00> : vector<8x12x24xf32>
    %27 = tpu.matmul %24, %26, %cst_24 {dimension_numbers = #tpu.dot_dimension_numbers<[2], [0], [0, 1], [1], [0, 0, 0, 1, 1, 1], [], []>} : vector<8x12x32xf32>, vector<32x24xf32>, vector<8x12x24xf32> -> vector<8x12x24xf32>
    "tpu.trace_stop"() : () -> ()
    %28 = arith.addf %23, %27 : vector<8x12x24xf32>
    %c0_25 = arith.constant 0 : index
    %c3 = arith.constant 3 : index
    %c0_26 = arith.constant 0 : index
    %29 = vector.load %arg9[%c0_25, %c3, %c0_26] : memref<8x16x32xf32, #tpu.memory_space<vmem>>, vector<8x12x32xf32>
    %30 = vector.extract_strided_slice %14 {offsets = [3, 0, 0], sizes = [1, 32, 24], strides = [1, 1, 1]} : vector<5x32x24xf32> to vector<1x32x24xf32>
    %31 = vector.shape_cast %30 : vector<1x32x24xf32> to vector<32x24xf32>
    "tpu.trace_start"() <{level = 10 : i32, message = "ble,ef->blf"}> : () -> ()
    %cst_27 = arith.constant dense<0.000000e+00> : vector<8x12x24xf32>
    %32 = tpu.matmul %29, %31, %cst_27 {dimension_numbers = #tpu.dot_dimension_numbers<[2], [0], [0, 1], [1], [0, 0, 0, 1, 1, 1], [], []>} : vector<8x12x32xf32>, vector<32x24xf32>, vector<8x12x24xf32> -> vector<8x12x24xf32>
    "tpu.trace_stop"() : () -> ()
    %33 = arith.addf %28, %32 : vector<8x12x24xf32>
    %c0_28 = arith.constant 0 : index
    %c4_29 = arith.constant 4 : index
    %c0_30 = arith.constant 0 : index
    %34 = vector.load %arg9[%c0_28, %c4_29, %c0_30] : memref<8x16x32xf32, #tpu.memory_space<vmem>>, vector<8x12x32xf32>
    %35 = vector.extract_strided_slice %14 {offsets = [4, 0, 0], sizes = [1, 32, 24], strides = [1, 1, 1]} : vector<5x32x24xf32> to vector<1x32x24xf32>
    %36 = vector.shape_cast %35 : vector<1x32x24xf32> to vector<32x24xf32>
    "tpu.trace_start"() <{level = 10 : i32, message = "ble,ef->blf"}> : () -> ()
    %cst_31 = arith.constant dense<0.000000e+00> : vector<8x12x24xf32>
    %37 = tpu.matmul %34, %36, %cst_31 {dimension_numbers = #tpu.dot_dimension_numbers<[2], [0], [0, 1], [1], [0, 0, 0, 1, 1, 1], [], []>} : vector<8x12x32xf32>, vector<32x24xf32>, vector<8x12x24xf32> -> vector<8x12x24xf32>
    "tpu.trace_stop"() : () -> ()
    %38 = arith.addf %33, %37 : vector<8x12x24xf32>
    %c0_32 = arith.constant 0 : index
    %c0_33 = arith.constant 0 : index
    %39 = vector.load %arg4[%c0_32, %c0_33] : memref<1x24xf32, #tpu.memory_space<vmem>>, vector<1x24xf32>
    %40 = vector.shape_cast %39 : vector<1x24xf32> to vector<1x1x24xf32>
    %41 = vector.broadcast %40 : vector<1x1x24xf32> to vector<8x12x24xf32>
    %42 = arith.addf %38, %41 : vector<8x12x24xf32>
    %cst_34 = arith.constant 0.000000e+00 : f32
    %43 = vector.broadcast %cst_34 : f32 to vector<8x12x24xf32>
    %44 = arith.maximumf %42, %43 : vector<8x12x24xf32>
    %c0_35 = arith.constant 0 : index
    %c0_36 = arith.constant 0 : index
    %45 = vector.load %arg5[%c0_35, %c0_36] : memref<12x24xf32, #tpu.memory_space<vmem>>, vector<12x24xf32>
    %46 = vector.shape_cast %45 : vector<12x24xf32> to vector<1x12x24xf32>
    %47 = vector.broadcast %46 : vector<1x12x24xf32> to vector<8x12x24xf32>
    %48 = arith.mulf %44, %47 : vector<8x12x24xf32>
    %cst_37 = arith.constant dense<0xFF800000> : vector<8x24xf32>
    %49 = vector.multi_reduction <maximumf>, %48, %cst_37 [1] : vector<8x12x24xf32> to vector<8x24xf32>
    %c0_38 = arith.constant 0 : index
    %c0_39 = arith.constant 0 : index
    %50 = vector.load %arg6[%c0_38, %c0_39] : memref<24x4xf32, #tpu.memory_space<vmem>>, vector<24x4xf32>
    %cst_40 = arith.constant dense<0.000000e+00> : vector<8x4xf32>
    %51 = tpu.matmul %49, %50, %cst_40 {dimension_numbers = #tpu.dot_dimension_numbers<[1], [0], [0], [1], [0, 0, 1, 1], [], []>} : vector<8x24xf32>, vector<24x4xf32>, vector<8x4xf32> -> vector<8x4xf32>
    %c0_41 = arith.constant 0 : index
    %c0_42 = arith.constant 0 : index
    %52 = vector.load %arg7[%c0_41, %c0_42] : memref<1x4xf32, #tpu.memory_space<vmem>>, vector<1x4xf32>
    %53 = vector.broadcast %52 : vector<1x4xf32> to vector<8x4xf32>
    %54 = arith.addf %51, %53 : vector<8x4xf32>
    %cst_43 = arith.constant dense<0xFF800000> : vector<8xf32>
    %55 = vector.multi_reduction <maximumf>, %54, %cst_43 [1] : vector<8x4xf32> to vector<8xf32>
    %56 = vector.shape_cast %55 : vector<8xf32> to vector<8x1xf32>
    %57 = vector.broadcast %56 : vector<8x1xf32> to vector<8x4xf32>
    %58 = arith.subf %54, %57 : vector<8x4xf32>
    %59 = math.exp %58 : vector<8x4xf32>
    %cst_44 = arith.constant dense<0.000000e+00> : vector<8xf32>
    %60 = vector.multi_reduction <add>, %59, %cst_44 [1] : vector<8x4xf32> to vector<8xf32>
    %61 = vector.shape_cast %60 : vector<8xf32> to vector<8x1xf32>
    %62 = tpu.reciprocal %61 : vector<8x1xf32> -> vector<8x1xf32>
    %63 = vector.broadcast %62 : vector<8x1xf32> to vector<8x4xf32>
    %64 = arith.mulf %59, %63 : vector<8x4xf32>
    %65 = tpu.iota {dimensions = array<i32: 1>} : vector<8x4xi32>
    %cst_45 = arith.constant dense<0xFF800000> : vector<8xf32>
    %66 = vector.multi_reduction <maximumf>, %64, %cst_45 [1] : vector<8x4xf32> to vector<8xf32>
    %67 = vector.shape_cast %66 : vector<8xf32> to vector<8x1xf32>
    %68 = vector.broadcast %67 : vector<8x1xf32> to vector<8x4xf32>
    %69 = arith.cmpf oge, %64, %68 : vector<8x4xf32>
    %c4_i32 = arith.constant 4 : i32
    %70 = vector.broadcast %c4_i32 : i32 to vector<8x4xi32>
    %71 = arith.select %69, %65, %70 : vector<8x4xi1>, vector<8x4xi32>
    %cst_46 = arith.constant dense<2147483647> : vector<8xi32>
    %72 = vector.multi_reduction <minsi>, %71, %cst_46 [1] : vector<8x4xi32> to vector<8xi32>
    %73 = vector.shape_cast %72 : vector<8xi32> to vector<8x1xi32>
    %74 = arith.sitofp %73 : vector<8x1xi32> to vector<8x1xf32>
    %cst_47 = arith.constant 0.000000e+00 : f32
    %75 = vector.broadcast %cst_47 : f32 to vector<8x3xf32>
    %76 = tpu.concatenate %64, %74, %75 in 1 : vector<8x4xf32>, vector<8x1xf32>, vector<8x3xf32> -> vector<8x8xf32>
    %c0_48 = arith.constant 0 : index
    %c0_49 = arith.constant 0 : index
    %77 = vector.load %arg8[%c0_48, %c0_49] : memref<8x8xf32, #tpu.memory_space<vmem>>, vector<8x8xf32>
    tpu.vector_store %arg8[%c0_48, %c0_49], %76 {strides = array<i32>} : memref<8x8xf32, #tpu.memory_space<vmem>>, vector<8x8xf32>,
    return
  }
  func.func @transform_0(%arg0: i32) -> (i32, i32) {
    %c0_i32 = arith.constant 0 : i32
    %c0_i32_0 = arith.constant 0 : i32
    return %arg0, %c0_i32 : i32, i32
  }
  func.func @transform_1(%arg0: i32) -> (i32, i32) {
    %c0_i32 = arith.constant 0 : i32
    %c0_i32_0 = arith.constant 0 : i32
    %c0_i32_1 = arith.constant 0 : i32
    return %c0_i32, %c0_i32_0 : i32, i32
  }
  func.func @transform_2(%arg0: i32) -> (i32, i32, i32) {
    %c0_i32 = arith.constant 0 : i32
    %c0_i32_0 = arith.constant 0 : i32
    %c0_i32_1 = arith.constant 0 : i32
    %c0_i32_2 = arith.constant 0 : i32
    return %c0_i32, %c0_i32_0, %c0_i32_1 : i32, i32, i32
  }
  func.func @transform_3(%arg0: i32) -> (i32, i32) {
    %c0_i32 = arith.constant 0 : i32
    %c0_i32_0 = arith.constant 0 : i32
    %c0_i32_1 = arith.constant 0 : i32
    return %c0_i32, %c0_i32_0 : i32, i32
  }
  func.func @transform_4(%arg0: i32) -> (i32, i32) {
    %c0_i32 = arith.constant 0 : i32
    %c0_i32_0 = arith.constant 0 : i32
    %c0_i32_1 = arith.constant 0 : i32
    return %c0_i32, %c0_i32_0 : i32, i32
  }
  func.func @transform_5(%arg0: i32) -> (i32, i32) {
    %c0_i32 = arith.constant 0 : i32
    %c0_i32_0 = arith.constant 0 : i32
    %c0_i32_1 = arith.constant 0 : i32
    return %c0_i32, %c0_i32_0 : i32, i32
  }
  func.func @transform_6(%arg0: i32) -> (i32, i32) {
    %c0_i32 = arith.constant 0 : i32
    %c0_i32_0 = arith.constant 0 : i32
    %c0_i32_1 = arith.constant 0 : i32
    return %c0_i32, %c0_i32_0 : i32, i32
  }
  func.func @transform_7(%arg0: i32) -> (i32, i32) {
    %c0_i32 = arith.constant 0 : i32
    %c0_i32_0 = arith.constant 0 : i32
    return %arg0, %c0_i32 : i32, i32
  }
}

</mosaic_0001>

<llo_original>
// kernel: cnn_text_classifier.1
$region0: #{cnn_text_classifier.1}
  #allocation0 [shape = 'u32[]', space=smem, size = 0x4, offset = 0x4, fixed_abs, tag = 'smem constant byte address 0x4 - core index']
  #allocation1 [shape = 'u32[144,128]{1,0:T(1,128)}', space=vmem, size = 0x12000, scoped, tag = 'internal scratch']
  #allocation2 [shape = 'f32[8,16,32]{2,1,0:T(8,128)}', space=vmem, size = 0x10000, scoped, tag = 'scratch operand']
  %s0 = inlined_call_operand.vmem [shape: s32[8,8], index: 0, kind: input, shape index: {}]
  %s1 = inlined_call_operand.vmem [shape: f32[128,32], index: 1, kind: input, shape index: {}]
  %s2 = inlined_call_operand.vmem [shape: f32[5,32,24], index: 2, kind: input, shape index: {}]
  %s3 = inlined_call_operand.vmem [shape: f32[1,24], index: 3, kind: input, shape index: {}]
  %s4 = inlined_call_operand.vmem [shape: f32[12,24], index: 4, kind: input, shape index: {}]
  %s5 = inlined_call_operand.vmem [shape: f32[24,4], index: 5, kind: input, shape index: {}]
  %s6 = inlined_call_operand.vmem [shape: f32[1,4], index: 6, kind: input, shape index: {}]
  %s7 = inlined_call_operand.vmem [shape: f32[8,8], index: 7, kind: output, shape index: {}]
  %s8 = sld [smem:[#allocation0]]
  $region38: #{cnn_text_classifier.1} parent=0
    _
  %s10 = ssub.s32 1, %s8
  %s11 = scalar_select 0, %s10, %s8
  // Predicated region
  $region2: #{cnn_text_classifier.1} parent=0 // pred_check
    _
  $region3: #{cnn_text_classifier.1} parent=0 // pred_check_branch
    %13 = sbr.rel (0) target = $region5
  $region4: #{cnn_text_classifier.1} parent=0 // pred_region
    _
  $region5: #{cnn_text_classifier.1} parent=0 // pred_fallthru
    _
  // Predicated region
  $region6: #{cnn_text_classifier.1} parent=0 // pred_check
    _
  $region7: #{cnn_text_classifier.1} parent=0 // pred_check_branch
    %15 = sbr.rel (0) target = $region9
  $region8: #{cnn_text_classifier.1} parent=0 // pred_region
    _
  $region9: #{cnn_text_classifier.1} parent=0 // pred_fallthru
    _
  // Predicated region
  $region10: #{cnn_text_classifier.1} parent=0 // pred_check
    _
  $region11: #{cnn_text_classifier.1} parent=0 // pred_check_branch
    %17 = sbr.rel (0) target = $region13
  $region12: #{cnn_text_classifier.1} parent=0 // pred_region
    _
  $region13: #{cnn_text_classifier.1} parent=0 // pred_fallthru
    _
  // Predicated region
  $region14: #{cnn_text_classifier.1} parent=0 // pred_check
    _
  $region15: #{cnn_text_classifier.1} parent=0 // pred_check_branch
    %19 = sbr.rel (0) target = $region17
  $region16: #{cnn_text_classifier.1} parent=0 // pred_region
    _
  $region17: #{cnn_text_classifier.1} parent=0 // pred_fallthru
    _
  // Predicated region
  $region18: #{cnn_text_classifier.1} parent=0 // pred_check
    _
  $region19: #{cnn_text_classifier.1} parent=0 // pred_check_branch
    %21 = sbr.rel (0) target = $region21
  $region20: #{cnn_text_classifier.1} parent=0 // pred_region
    _
  $region21: #{cnn_text_classifier.1} parent=0 // pred_fallthru
    _
  // Predicated region
  $region22: #{cnn_text_classifier.1} parent=0 // pred_check
    _
  $region23: #{cnn_text_classifier.1} parent=0 // pred_check_branch
    %23 = sbr.rel (0) target = $region25
  $region24: #{cnn_text_classifier.1} parent=0 // pred_region
    _
  $region25: #{cnn_text_classifier.1} parent=0 // pred_fallthru
    _
  // Predicated region
  $region26: #{cnn_text_classifier.1} parent=0 // pred_check
    _
  $region27: #{cnn_text_classifier.1} parent=0 // pred_check_branch
    %25 = sbr.rel (0) target = $region29
  $region28: #{cnn_text_classifier.1} parent=0 // pred_region
    _
  $region29: #{cnn_text_classifier.1} parent=0 // pred_fallthru
    _
  %v26 = vld [vmem:[%s0] sm:$0xff]
  %v27 = vlaneseq
  %v28 = vshrl.u32 %v27, 7
  %v29 = vsub.s32 0, %v28
  %v30 = vrot.slane %v26, %v29
  %32 = vbcast.lane.b32.xlu0 %v30, 256
  %v33 = vpop.permute.xlu0 %32
  %v34 = vlaneseq
  %v35 = vshrl.u32 %v34, 7
  %v36 = vsub.s32 1, %v35
  %v37 = vrot.slane %v26, %v36
  %39 = vbcast.lane.b32.xlu0 %v37, 256
  %v40 = vpop.permute.xlu0 %39
  %v41 = vlaneseq
  %v42 = vshrl.u32 %v41, 7
  %v43 = vsub.s32 2, %v42
  %v44 = vrot.slane %v26, %v43
  %46 = vbcast.lane.b32.xlu0 %v44, 256
  %v47 = vpop.permute.xlu0 %46
  %v48 = vlaneseq
  %v49 = vshrl.u32 %v48, 7
  %v50 = vsub.s32 3, %v49
  %v51 = vrot.slane %v26, %v50
  %53 = vbcast.lane.b32.xlu0 %v51, 256
  %v54 = vpop.permute.xlu0 %53
  %v55 = vlaneseq
  %v56 = vshrl.u32 %v55, 7
  %v57 = vsub.s32 4, %v56
  %v58 = vrot.slane %v26, %v57
  %60 = vbcast.lane.b32.xlu0 %v58, 256
  %v61 = vpop.permute.xlu0 %60
  %v62 = vlaneseq
  %v63 = vshrl.u32 %v62, 7
  %v64 = vsub.s32 5, %v63
  %v65 = vrot.slane %v26, %v64
  %67 = vbcast.lane.b32.xlu0 %v65, 256
  %v68 = vpop.permute.xlu0 %67
  %v69 = vlaneseq
  %v70 = vshrl.u32 %v69, 7
  %v71 = vsub.s32 6, %v70
  %v72 = vrot.slane %v26, %v71
  %74 = vbcast.lane.b32.xlu0 %v72, 256
  %v75 = vpop.permute.xlu0 %74
  %v76 = vlaneseq
  %v77 = vshrl.u32 %v76, 7
  %v78 = vsub.s32 7, %v77
  %v79 = vrot.slane %v26, %v78
  %81 = vbcast.lane.b32.xlu0 %v79, 256
  %v82 = vpop.permute.xlu0 %81
  %v83 = vlaneseq
  %v84 = vand.u32 %v83, 127
  %vm85 = vcmp.eq.s32.totalorder %v33, %v84
  %vm86 = vcmp.eq.s32.totalorder %v40, %v84
  %vm87 = vcmp.eq.s32.totalorder %v47, %v84
  %vm88 = vcmp.eq.s32.totalorder %v54, %v84
  %vm89 = vcmp.eq.s32.totalorder %v61, %v84
  %vm90 = vcmp.eq.s32.totalorder %v68, %v84
  %vm91 = vcmp.eq.s32.totalorder %v75, %v84
  %vm92 = vcmp.eq.s32.totalorder %v82, %v84
  %v93 = vsel %vm85, 1, 0
  %v94 = vsel %vm86, 1, 0
  %v95 = vsel %vm87, 1, 0
  %v96 = vsel %vm88, 1, 0
  %v97 = vsel %vm89, 1, 0
  %v98 = vsel %vm90, 1, 0
  %v99 = vsel %vm91, 1, 0
  %v100 = vsel %vm92, 1, 0
  %v101 = vcvt.s32.f32 %v93
  %v102 = vcvt.s32.f32 %v94
  %v103 = vcvt.s32.f32 %v95
  %v104 = vcvt.s32.f32 %v96
  %v105 = vcvt.s32.f32 %v97
  %v106 = vcvt.s32.f32 %v98
  %v107 = vcvt.s32.f32 %v99
  %v108 = vcvt.s32.f32 %v100
  %v109 = vld [vmem:[%s1] sm:$0xff]
  %v110 = vld [vmem:[%s1 + $0x8] sm:$0xff]
  %v111 = vld [vmem:[%s1 + $0x10] sm:$0xff]
  %v112 = vld [vmem:[%s1 + $0x18] sm:$0xff]
  %v113 = vld [vmem:[%s1 + $0x20] sm:$0xff]
  %v114 = vld [vmem:[%s1 + $0x28] sm:$0xff]
  %v115 = vld [vmem:[%s1 + $0x30] sm:$0xff]
  %v116 = vld [vmem:[%s1 + $0x38] sm:$0xff]
  %v117 = vld [vmem:[%s1 + $0x40] sm:$0xff]
  %v118 = vld [vmem:[%s1 + $0x48] sm:$0xff]
  %v119 = vld [vmem:[%s1 + $0x50] sm:$0xff]
  %v120 = vld [vmem:[%s1 + $0x58] sm:$0xff]
  %v121 = vld [vmem:[%s1 + $0x60] sm:$0xff]
  %v122 = vld [vmem:[%s1 + $0x68] sm:$0xff]
  %v123 = vld [vmem:[%s1 + $0x70] sm:$0xff]
  %v124 = vld [vmem:[%s1 + $0x78] sm:$0xff]
  %125 = vmatprep.subr.mxu0 0.0
  %126 = vmatpush1.msra.mxu0 %v124
  %127 = vmatprep.subr.mxu0 0.0
  %128 = vmatpush1.msra.mxu0 %v123
  %129 = vmatprep.subr.mxu0 0.0
  %130 = vmatpush1.msra.mxu0 %v122
  %131 = vmatprep.subr.mxu0 0.0
  %132 = vmatpush1.msra.mxu0 %v121
  %133 = vmatprep.subr.mxu0 0.0
  %134 = vmatpush1.msra.mxu0 %v120
  %135 = vmatprep.subr.mxu0 0.0
  %136 = vmatpush1.msra.mxu0 %v119
  %137 = vmatprep.subr.mxu0 0.0
  %138 = vmatpush1.msra.mxu0 %v118
  %139 = vmatprep.subr.mxu0 0.0
  %140 = vmatpush1.msra.mxu0 %v117
  %141 = vmatprep.subr.mxu0 0.0
  %142 = vmatpush1.msra.mxu0 %v116
  %143 = vmatprep.subr.mxu0 0.0
  %144 = vmatpush1.msra.mxu0 %v115
  %145 = vmatprep.subr.mxu0 0.0
  %146 = vmatpush1.msra.mxu0 %v114
  %147 = vmatprep.subr.mxu0 0.0
  %148 = vmatpush1.msra.mxu0 %v113
  %149 = vmatprep.subr.mxu0 0.0
  %150 = vmatpush1.msra.mxu0 %v112
  %151 = vmatprep.subr.mxu0 0.0
  %152 = vmatpush1.msra.mxu0 %v111
  %153 = vmatprep.subr.mxu0 0.0
  %154 = vmatpush1.msra.mxu0 %v110
  %155 = vmatprep.subr.mxu0 0.0
  %156 = vmatpush1.msra.mxu0 %v109
  %157 = vmatprep.subr.mxu0 0.0
  %158 = vmatpush2.msra.mxu0 0.0
  %159 = vmatprep.subr.mxu0 0.0
  %160 = vmatpush2.msra.mxu0 0.0
  %161 = vmatprep.subr.mxu0 0.0
  %162 = vmatpush2.msra.mxu0 0.0
  %163 = vmatprep.subr.mxu0 0.0
  %164 = vmatpush2.msra.mxu0 0.0
  %165 = vmatprep.subr.mxu0 0.0
  %166 = vmatpush2.msra.mxu0 0.0
  %167 = vmatprep.subr.mxu0 0.0
  %168 = vmatpush2.msra.mxu0 0.0
  %169 = vmatprep.subr.mxu0 0.0
  %170 = vmatpush2.msra.mxu0 0.0
  %171 = vmatprep.subr.mxu0 0.0
  %172 = vmatpush2.msra.mxu0 0.0
  %173 = vmatprep.subr.mxu0 0.0
  %174 = vmatpush2.msra.mxu0 0.0
  %175 = vmatprep.subr.mxu0 0.0
  %176 = vmatpush2.msra.mxu0 0.0
  %177 = vmatprep.subr.mxu0 0.0
  %178 = vmatpush2.msra.mxu0 0.0
  %179 = vmatprep.subr.mxu0 0.0
  %180 = vmatpush2.msra.mxu0 0.0
  %181 = vmatprep.subr.mxu0 0.0
  %182 = vmatpush2.msra.mxu0 0.0
  %183 = vmatprep.subr.mxu0 0.0
  %184 = vmatpush2.msra.mxu0 0.0
  %185 = vmatprep.subr.mxu0 0.0
  %186 = vmatpush2.msra.mxu0 0.0
  %187 = vmatprep.subr.mxu0 0.0
  %188 = vmatpush2.msra.mxu0 0.0
  %189 = vmatprep.mubr.f32.mxu0 0.0
  %190 = vmatmul.mubr.f32.gmra.mxu0 %v101
  %v191 = vpop.f32.mrf.mxu0
  %v192 = vadd.f32 0.0, %v191
  %v193 = vpop.f32.mrf.mxu0
  %194 = vmatprep.mubr.f32.mxu0 0.0
  %195 = vmatmul.mubr.f32.gmra.mxu0 %v102
  %v196 = vpop.f32.mrf.mxu0
  %v197 = vadd.f32 0.0, %v196
  %v198 = vpop.f32.mrf.mxu0
  %199 = vmatprep.mubr.f32.mxu0 0.0
  %200 = vmatmul.mubr.f32.gmra.mxu0 %v103
  %v201 = vpop.f32.mrf.mxu0
  %v202 = vadd.f32 0.0, %v201
  %v203 = vpop.f32.mrf.mxu0
  %204 = vmatprep.mubr.f32.mxu0 0.0
  %205 = vmatmul.mubr.f32.gmra.mxu0 %v104
  %v206 = vpop.f32.mrf.mxu0
  %v207 = vadd.f32 0.0, %v206
  %v208 = vpop.f32.mrf.mxu0
  %209 = vmatprep.mubr.f32.mxu0 0.0
  %210 = vmatmul.mubr.f32.gmra.mxu0 %v105
  %v211 = vpop.f32.mrf.mxu0
  %v212 = vadd.f32 0.0, %v211
  %v213 = vpop.f32.mrf.mxu0
  %214 = vmatprep.mubr.f32.mxu0 0.0
  %215 = vmatmul.mubr.f32.gmra.mxu0 %v106
  %v216 = vpop.f32.mrf.mxu0
  %v217 = vadd.f32 0.0, %v216
  %v218 = vpop.f32.mrf.mxu0
  %219 = vmatprep.mubr.f32.mxu0 0.0
  %220 = vmatmul.mubr.f32.gmra.mxu0 %v107
  %v221 = vpop.f32.mrf.mxu0
  %v222 = vadd.f32 0.0, %v221
  %v223 = vpop.f32.mrf.mxu0
  %224 = vmatprep.mubr.f32.mxu0 0.0
  %225 = vmatmul.mubr.f32.gmra.mxu0 %v108
  %v226 = vpop.f32.mrf.mxu0
  %v227 = vadd.f32 0.0, %v226
  %v228 = vpop.f32.mrf.mxu0
  %229 = vdwg.mxu0
  %vm230 = vcmask 257024
  %231 = vst.msk [vmem:[#allocation2] sm:$0xf] %vm230, 0.0
  %232 = vst.msk [vmem:[#allocation2 + $0x10] sm:$0xf] %vm230, 0.0
  %233 = vst.msk [vmem:[#allocation2 + $0x20] sm:$0xf] %vm230, 0.0
  %234 = vst.msk [vmem:[#allocation2 + $0x30] sm:$0xf] %vm230, 0.0
  %235 = vst.msk [vmem:[#allocation2 + $0x40] sm:$0xf] %vm230, 0.0
  %236 = vst.msk [vmem:[#allocation2 + $0x50] sm:$0xf] %vm230, 0.0
  %237 = vst.msk [vmem:[#allocation2 + $0x60] sm:$0xf] %vm230, 0.0
  %238 = vst.msk [vmem:[#allocation2 + $0x70] sm:$0xf] %vm230, 0.0
  %239 = vst.msk [vmem:[#allocation2 + $0xc] sm:$0xf] %vm230, 0.0
  %240 = vst.msk [vmem:[#allocation2 + $0x1c] sm:$0xf] %vm230, 0.0
  %241 = vst.msk [vmem:[#allocation2 + $0x2c] sm:$0xf] %vm230, 0.0
  %242 = vst.msk [vmem:[#allocation2 + $0x3c] sm:$0xf] %vm230, 0.0
  %243 = vst.msk [vmem:[#allocation2 + $0x4c] sm:$0xf] %vm230, 0.0
  %244 = vst.msk [vmem:[#allocation2 + $0x5c] sm:$0xf] %vm230, 0.0
  %245 = vst.msk [vmem:[#allocation2 + $0x6c] sm:$0xf] %vm230, 0.0
  %246 = vst.msk [vmem:[#allocation2 + $0x7c] sm:$0xf] %vm230, 0.0
  %vm247 = vcmask 261120
  %248 = vst.msk [vmem:[#allocation2 + $0x4] sm:$0xff] %vm247, %v192
  %249 = vst.msk [vmem:[#allocation2 + $0x14] sm:$0xff] %vm247, %v197
  %250 = vst.msk [vmem:[#allocation2 + $0x24] sm:$0xff] %vm247, %v202
  %251 = vst.msk [vmem:[#allocation2 + $0x34] sm:$0xff] %vm247, %v207
  %252 = vst.msk [vmem:[#allocation2 + $0x44] sm:$0xff] %vm247, %v212
  %253 = vst.msk [vmem:[#allocation2 + $0x54] sm:$0xff] %vm247, %v217
  %254 = vst.msk [vmem:[#allocation2 + $0x64] sm:$0xff] %vm247, %v222
  %255 = vst.msk [vmem:[#allocation2 + $0x74] sm:$0xff] %vm247, %v227
  %v256 = vld [vmem:[%s2] sm:$0xff]
  %v257 = vld [vmem:[%s2 + $0x8] sm:$0xff]
  %v258 = vld [vmem:[%s2 + $0x10] sm:$0xff]
  %v259 = vld [vmem:[%s2 + $0x18] sm:$0xff]
  %v260 = vld [vmem:[%s2 + $0x20] sm:$0xff]
  %v261 = vld [vmem:[%s2 + $0x28] sm:$0xff]
  %v262 = vld [vmem:[%s2 + $0x30] sm:$0xff]
  %v263 = vld [vmem:[%s2 + $0x38] sm:$0xff]
  %v264 = vld [vmem:[%s2 + $0x40] sm:$0xff]
  %v265 = vld [vmem:[%s2 + $0x48] sm:$0xff]
  %v266 = vld [vmem:[%s2 + $0x50] sm:$0xff]
  %v267 = vld [vmem:[%s2 + $0x58] sm:$0xff]
  %v268 = vld [vmem:[%s2 + $0x60] sm:$0xff]
  %v269 = vld [vmem:[%s2 + $0x68] sm:$0xff]
  %v270 = vld [vmem:[%s2 + $0x70] sm:$0xff]
  %v271 = vld [vmem:[%s2 + $0x78] sm:$0xff]
  %v272 = vld [vmem:[%s2 + $0x80] sm:$0xff]
  %v273 = vld [vmem:[%s2 + $0x88] sm:$0xff]
  %v274 = vld [vmem:[%s2 + $0x90] sm:$0xff]
  %v275 = vld [vmem:[%s2 + $0x98] sm:$0xff]
  %v276 = vld [vmem:[#allocation2] sm:$0xff]
  %v277 = vld [vmem:[#allocation2 + $0x8] sm:$0xf]
  %v278 = vld [vmem:[#allocation2 + $0x10] sm:$0xff]
  %v279 = vld [vmem:[#allocation2 + $0x18] sm:$0xf]
  %v280 = vld [vmem:[#allocation2 + $0x20] sm:$0xff]
  %v281 = vld [vmem:[#allocation2 + $0x28] sm:$0xf]
  %v282 = vld [vmem:[#allocation2 + $0x30] sm:$0xff]
  %v283 = vld [vmem:[#allocation2 + $0x38] sm:$0xf]
  %v284 = vld [vmem:[#allocation2 + $0x40] sm:$0xff]
  %v285 = vld [vmem:[#allocation2 + $0x48] sm:$0xf]
  %v286 = vld [vmem:[#allocation2 + $0x50] sm:$0xff]
  %v287 = vld [vmem:[#allocation2 + $0x58] sm:$0xf]
  %v288 = vld [vmem:[#allocation2 + $0x60] sm:$0xff]
  %v289 = vld [vmem:[#allocation2 + $0x68] sm:$0xf]
  %v290 = vld [vmem:[#allocation2 + $0x70] sm:$0xff]
  %v291 = vld [vmem:[#allocation2 + $0x78] sm:$0xf]
  %v292 = vld [vmem:[#allocation2 + $0x1] sm:$0xff]
  %v293 = vld [vmem:[#allocation2 + $0x9] sm:$0xf]
  %v294 = vld [vmem:[#allocation2 + $0x11] sm:$0xff]
  %v295 = vld [vmem:[#allocation2 + $0x19] sm:$0xf]
  %v296 = vld [vmem:[#allocation2 + $0x21] sm:$0xff]
  %v297 = vld [vmem:[#allocation2 + $0x29] sm:$0xf]
  %v298 = vld [vmem:[#allocation2 + $0x31] sm:$0xff]
  %v299 = vld [vmem:[#allocation2 + $0x39] sm:$0xf]
  %v300 = vld [vmem:[#allocation2 + $0x41] sm:$0xff]
  %v301 = vld [vmem:[#allocation2 + $0x49] sm:$0xf]
  %v302 = vld [vmem:[#allocation2 + $0x51] sm:$0xff]
  %v303 = vld [vmem:[#allocation2 + $0x59] sm:$0xf]
  %v304 = vld [vmem:[#allocation2 + $0x61] sm:$0xff]
  %v305 = vld [vmem:[#allocation2 + $0x69] sm:$0xf]
  %v306 = vld [vmem:[#allocation2 + $0x71] sm:$0xff]
  %v307 = vld [vmem:[#allocation2 + $0x79] sm:$0xf]
  %v324 = vcombine.high %v292, %v292
  %v325 = vcombine.high %v294, %v294
  %v326 = vcombine.high %v296, %v296
  %v327 = vcombine.high %v298, %v298
  %v328 = vcombine.high %v300, %v300
  %v329 = vcombine.high %v302, %v302
  %v330 = vcombine.high %v304, %v304
  %v331 = vcombine.high %v306, %v306
  %v332 = vcombine.low %v292, %v324
  %v333 = vcombine.low %v293, %v294
  %v334 = vcombine.low %v325, %v295
  %v335 = vcombine.low %v296, %v326
  %v336 = vcombine.low %v297, %v298
  %v337 = vcombine.low %v327, %v299
  %v338 = vcombine.low %v300, %v328
  %v339 = vcombine.low %v301, %v302
  %v340 = vcombine.low %v329, %v303
  %v341 = vcombine.low %v304, %v330
  %v342 = vcombine.low %v305, %v306
  %v343 = vcombine.low %v331, %v307
  %v344 = vsel %vm247, %v332, 0
  %v346 = vsel %vm247, %v333, 0
  %v348 = vsel %vm247, %v334, 0
  %v350 = vsel %vm247, %v335, 0
  %v352 = vsel %vm247, %v336, 0
  %v354 = vsel %vm247, %v337, 0
  %v356 = vsel %vm247, %v338, 0
  %v358 = vsel %vm247, %v339, 0
  %v360 = vsel %vm247, %v340, 0
  %v362 = vsel %vm247, %v341, 0
  %v364 = vsel %vm247, %v342, 0
  %v366 = vsel %vm247, %v343, 0
  %368 = vmatprep.subr.mxu0 0.0
  %369 = vmatpush1.msra.mxu0 0.0
  %370 = vmatprep.subr.mxu0 0.0
  %371 = vmatpush1.msra.mxu0 0.0
  %372 = vmatprep.subr.mxu0 0.0
  %373 = vmatpush1.msra.mxu0 0.0
  %374 = vmatprep.subr.mxu0 0.0
  %375 = vmatpush1.msra.mxu0 0.0
  %376 = vmatprep.subr.mxu0 0.0
  %377 = vmatpush1.msra.mxu0 0.0
  %378 = vmatprep.subr.mxu0 0.0
  %379 = vmatpush1.msra.mxu0 0.0
  %380 = vmatprep.subr.mxu0 0.0
  %381 = vmatpush1.msra.mxu0 0.0
  %382 = vmatprep.subr.mxu0 0.0
  %383 = vmatpush1.msra.mxu0 0.0
  %384 = vmatprep.subr.mxu0 0.0
  %385 = vmatpush1.msra.mxu0 0.0
  %386 = vmatprep.subr.mxu0 0.0
  %387 = vmatpush1.msra.mxu0 0.0
  %388 = vmatprep.subr.mxu0 0.0
  %389 = vmatpush1.msra.mxu0 0.0
  %390 = vmatprep.subr.mxu0 0.0
  %391 = vmatpush1.msra.mxu0 0.0
  %392 = vmatprep.subr.mxu0 0.0
  %393 = vmatpush1.msra.mxu0 %v263
  %394 = vmatprep.subr.mxu0 0.0
  %395 = vmatpush1.msra.mxu0 %v262
  %396 = vmatprep.subr.mxu0 0.0
  %397 = vmatpush1.msra.mxu0 %v261
  %398 = vmatprep.subr.mxu0 0.0
  %399 = vmatpush1.msra.mxu0 %v260
  %400 = vmatprep.subr.mxu0 0.0
  %401 = vmatpush2.msra.mxu0 0.0
  %402 = vmatprep.subr.mxu0 0.0
  %403 = vmatpush2.msra.mxu0 0.0
  %404 = vmatprep.subr.mxu0 0.0
  %405 = vmatpush2.msra.mxu0 0.0
  %406 = vmatprep.subr.mxu0 0.0
  %407 = vmatpush2.msra.mxu0 0.0
  %408 = vmatprep.subr.mxu0 0.0
  %409 = vmatpush2.msra.mxu0 0.0
  %410 = vmatprep.subr.mxu0 0.0
  %411 = vmatpush2.msra.mxu0 0.0
  %412 = vmatprep.subr.mxu0 0.0
  %413 = vmatpush2.msra.mxu0 0.0
  %414 = vmatprep.subr.mxu0 0.0
  %415 = vmatpush2.msra.mxu0 0.0
  %416 = vmatprep.subr.mxu0 0.0
  %417 = vmatpush2.msra.mxu0 0.0
  %418 = vmatprep.subr.mxu0 0.0
  %419 = vmatpush2.msra.mxu0 0.0
  %420 = vmatprep.subr.mxu0 0.0
  %421 = vmatpush2.msra.mxu0 0.0
  %422 = vmatprep.subr.mxu0 0.0
  %423 = vmatpush2.msra.mxu0 0.0
  %424 = vmatprep.subr.mxu0 0.0
  %425 = vmatpush2.msra.mxu0 0.0
  %426 = vmatprep.subr.mxu0 0.0
  %427 = vmatpush2.msra.mxu0 0.0
  %428 = vmatprep.subr.mxu0 0.0
  %429 = vmatpush2.msra.mxu0 0.0
  %430 = vmatprep.subr.mxu0 0.0
  %431 = vmatpush2.msra.mxu0 0.0
  %432 = vmatprep.mubr.f32.mxu0 0.0
  %433 = vmatmul.mubr.f32.gmra.mxu0 %v344
  %v434 = vpop.f32.mrf.mxu0
  %v435 = vadd.f32 0.0, %v434
  %v436 = vpop.f32.mrf.mxu0
  %437 = vmatprep.mubr.f32.mxu0 0.0
  %438 = vmatmul.mubr.f32.gmra.mxu0 %v346
  %v439 = vpop.f32.mrf.mxu0
  %v440 = vadd.f32 0.0, %v439
  %v441 = vpop.f32.mrf.mxu0
  %442 = vmatprep.mubr.f32.mxu0 0.0
  %443 = vmatmul.mubr.f32.gmra.mxu0 %v348
  %v444 = vpop.f32.mrf.mxu0
  %v445 = vadd.f32 0.0, %v444
  %v446 = vpop.f32.mrf.mxu0
  %447 = vmatprep.mubr.f32.mxu0 0.0
  %448 = vmatmul.mubr.f32.gmra.mxu0 %v350
  %v449 = vpop.f32.mrf.mxu0
  %v450 = vadd.f32 0.0, %v449
  %v451 = vpop.f32.mrf.mxu0
  %452 = vmatprep.mubr.f32.mxu0 0.0
  %453 = vmatmul.mubr.f32.gmra.mxu0 %v352
  %v454 = vpop.f32.mrf.mxu0
  %v455 = vadd.f32 0.0, %v454
  %v456 = vpop.f32.mrf.mxu0
  %457 = vmatprep.mubr.f32.mxu0 0.0
  %458 = vmatmul.mubr.f32.gmra.mxu0 %v354
  %v459 = vpop.f32.mrf.mxu0
  %v460 = vadd.f32 0.0, %v459
  %v461 = vpop.f32.mrf.mxu0
  %462 = vmatprep.mubr.f32.mxu0 0.0
  %463 = vmatmul.mubr.f32.gmra.mxu0 %v356
  %v464 = vpop.f32.mrf.mxu0
  %v465 = vadd.f32 0.0, %v464
  %v466 = vpop.f32.mrf.mxu0
  %467 = vmatprep.mubr.f32.mxu0 0.0
  %468 = vmatmul.mubr.f32.gmra.mxu0 %v358
  %v469 = vpop.f32.mrf.mxu0
  %v470 = vadd.f32 0.0, %v469
  %v471 = vpop.f32.mrf.mxu0
  %472 = vmatprep.mubr.f32.mxu0 0.0
  %473 = vmatmul.mubr.f32.gmra.mxu0 %v360
  %v474 = vpop.f32.mrf.mxu0
  %v475 = vadd.f32 0.0, %v474
  %v476 = vpop.f32.mrf.mxu0
  %477 = vmatprep.mubr.f32.mxu0 0.0
  %478 = vmatmul.mubr.f32.gmra.mxu0 %v362
  %v479 = vpop.f32.mrf.mxu0
  %v480 = vadd.f32 0.0, %v479
  %v481 = vpop.f32.mrf.mxu0
  %482 = vmatprep.mubr.f32.mxu0 0.0
  %483 = vmatmul.mubr.f32.gmra.mxu0 %v364
  %v484 = vpop.f32.mrf.mxu0
  %v485 = vadd.f32 0.0, %v484
  %v486 = vpop.f32.mrf.mxu0
  %487 = vmatprep.mubr.f32.mxu0 0.0
  %488 = vmatmul.mubr.f32.gmra.mxu0 %v366
  %v489 = vpop.f32.mrf.mxu0
  %v490 = vadd.f32 0.0, %v489
  %v491 = vpop.f32.mrf.mxu0
  %492 = vdwg.mxu0
  %v509 = vcombine.high %v276, %v276
  %v510 = vcombine.high %v278, %v278
  %v511 = vcombine.high %v280, %v280
  %v512 = vcombine.high %v282, %v282
  %v513 = vcombine.high %v284, %v284
  %v514 = vcombine.high %v286, %v286
  %v515 = vcombine.high %v288, %v288
  %v516 = vcombine.high %v290, %v290
  %v517 = vcombine.low %v276, %v509
  %v518 = vcombine.low %v277, %v278
  %v519 = vcombine.low %v510, %v279
  %v520 = vcombine.low %v280, %v511
  %v521 = vcombine.low %v281, %v282
  %v522 = vcombine.low %v512, %v283
  %v523 = vcombine.low %v284, %v513
  %v524 = vcombine.low %v285, %v286
  %v525 = vcombine.low %v514, %v287
  %v526 = vcombine.low %v288, %v515
  %v527 = vcombine.low %v289, %v290
  %v528 = vcombine.low %v516, %v291
  %v529 = vsel %vm247, %v517, 0
  %v531 = vsel %vm247, %v518, 0
  %v533 = vsel %vm247, %v519, 0
  %v535 = vsel %vm247, %v520, 0
  %v537 = vsel %vm247, %v521, 0
  %v539 = vsel %vm247, %v522, 0
  %v541 = vsel %vm247, %v523, 0
  %v543 = vsel %vm247, %v524, 0
  %v545 = vsel %vm247, %v525, 0
  %v547 = vsel %vm247, %v526, 0
  %v549 = vsel %vm247, %v527, 0
  %v551 = vsel %vm247, %v528, 0
  %553 = vmatprep.subr.mxu0 0.0
  %554 = vmatpush1.msra.mxu0 0.0
  %555 = vmatprep.subr.mxu0 0.0
  %556 = vmatpush1.msra.mxu0 0.0
  %557 = vmatprep.subr.mxu0 0.0
  %558 = vmatpush1.msra.mxu0 0.0
  %559 = vmatprep.subr.mxu0 0.0
  %560 = vmatpush1.msra.mxu0 0.0
  %561 = vmatprep.subr.mxu0 0.0
  %562 = vmatpush1.msra.mxu0 0.0
  %563 = vmatprep.subr.mxu0 0.0
  %564 = vmatpush1.msra.mxu0 0.0
  %565 = vmatprep.subr.mxu0 0.0
  %566 = vmatpush1.msra.mxu0 0.0
  %567 = vmatprep.subr.mxu0 0.0
  %568 = vmatpush1.msra.mxu0 0.0
  %569 = vmatprep.subr.mxu0 0.0
  %570 = vmatpush1.msra.mxu0 0.0
  %571 = vmatprep.subr.mxu0 0.0
  %572 = vmatpush1.msra.mxu0 0.0
  %573 = vmatprep.subr.mxu0 0.0
  %574 = vmatpush1.msra.mxu0 0.0
  %575 = vmatprep.subr.mxu0 0.0
  %576 = vmatpush1.msra.mxu0 0.0
  %577 = vmatprep.subr.mxu0 0.0
  %578 = vmatpush1.msra.mxu0 %v259
  %579 = vmatprep.subr.mxu0 0.0
  %580 = vmatpush1.msra.mxu0 %v258
  %581 = vmatprep.subr.mxu0 0.0
  %582 = vmatpush1.msra.mxu0 %v257
  %583 = vmatprep.subr.mxu0 0.0
  %584 = vmatpush1.msra.mxu0 %v256
  %585 = vmatprep.subr.mxu0 0.0
  %586 = vmatpush2.msra.mxu0 0.0
  %587 = vmatprep.subr.mxu0 0.0
  %588 = vmatpush2.msra.mxu0 0.0
  %589 = vmatprep.subr.mxu0 0.0
  %590 = vmatpush2.msra.mxu0 0.0
  %591 = vmatprep.subr.mxu0 0.0
  %592 = vmatpush2.msra.mxu0 0.0
  %593 = vmatprep.subr.mxu0 0.0
  %594 = vmatpush2.msra.mxu0 0.0
  %595 = vmatprep.subr.mxu0 0.0
  %596 = vmatpush2.msra.mxu0 0.0
  %597 = vmatprep.subr.mxu0 0.0
  %598 = vmatpush2.msra.mxu0 0.0
  %599 = vmatprep.subr.mxu0 0.0
  %600 = vmatpush2.msra.mxu0 0.0
  %601 = vmatprep.subr.mxu0 0.0
  %602 = vmatpush2.msra.mxu0 0.0
  %603 = vmatprep.subr.mxu0 0.0
  %604 = vmatpush2.msra.mxu0 0.0
  %605 = vmatprep.subr.mxu0 0.0
  %606 = vmatpush2.msra.mxu0 0.0
  %607 = vmatprep.subr.mxu0 0.0
  %608 = vmatpush2.msra.mxu0 0.0
  %609 = vmatprep.subr.mxu0 0.0
  %610 = vmatpush2.msra.mxu0 0.0
  %611 = vmatprep.subr.mxu0 0.0
  %612 = vmatpush2.msra.mxu0 0.0
  %613 = vmatprep.subr.mxu0 0.0
  %614 = vmatpush2.msra.mxu0 0.0
  %615 = vmatprep.subr.mxu0 0.0
  %616 = vmatpush2.msra.mxu0 0.0
  %617 = vmatprep.mubr.f32.mxu0 0.0
  %618 = vmatmul.mubr.f32.gmra.mxu0 %v529
  %v619 = vpop.f32.mrf.mxu0
  %v620 = vadd.f32 %v435, %v619
  %v621 = vpop.f32.mrf.mxu0
  %622 = vmatprep.mubr.f32.mxu0 0.0
  %623 = vmatmul.mubr.f32.gmra.mxu0 %v531
  %v624 = vpop.f32.mrf.mxu0
  %v625 = vadd.f32 %v440, %v624
  %v626 = vpop.f32.mrf.mxu0
  %627 = vmatprep.mubr.f32.mxu0 0.0
  %628 = vmatmul.mubr.f32.gmra.mxu0 %v533
  %v629 = vpop.f32.mrf.mxu0
  %v630 = vadd.f32 %v445, %v629
  %v631 = vpop.f32.mrf.mxu0
  %632 = vmatprep.mubr.f32.mxu0 0.0
  %633 = vmatmul.mubr.f32.gmra.mxu0 %v535
  %v634 = vpop.f32.mrf.mxu0
  %v635 = vadd.f32 %v450, %v634
  %v636 = vpop.f32.mrf.mxu0
  %637 = vmatprep.mubr.f32.mxu0 0.0
  %638 = vmatmul.mubr.f32.gmra.mxu0 %v537
  %v639 = vpop.f32.mrf.mxu0
  %v640 = vadd.f32 %v455, %v639
  %v641 = vpop.f32.mrf.mxu0
  %642 = vmatprep.mubr.f32.mxu0 0.0
  %643 = vmatmul.mubr.f32.gmra.mxu0 %v539
  %v644 = vpop.f32.mrf.mxu0
  %v645 = vadd.f32 %v460, %v644
  %v646 = vpop.f32.mrf.mxu0
  %647 = vmatprep.mubr.f32.mxu0 0.0
  %648 = vmatmul.mubr.f32.gmra.mxu0 %v541
  %v649 = vpop.f32.mrf.mxu0
  %v650 = vadd.f32 %v465, %v649
  %v651 = vpop.f32.mrf.mxu0
  %652 = vmatprep.mubr.f32.mxu0 0.0
  %653 = vmatmul.mubr.f32.gmra.mxu0 %v543
  %v654 = vpop.f32.mrf.mxu0
  %v655 = vadd.f32 %v470, %v654
  %v656 = vpop.f32.mrf.mxu0
  %657 = vmatprep.mubr.f32.mxu0 0.0
  %658 = vmatmul.mubr.f32.gmra.mxu0 %v545
  %v659 = vpop.f32.mrf.mxu0
  %v660 = vadd.f32 %v475, %v659
  %v661 = vpop.f32.mrf.mxu0
  %662 = vmatprep.mubr.f32.mxu0 0.0
  %663 = vmatmul.mubr.f32.gmra.mxu0 %v547
  %v664 = vpop.f32.mrf.mxu0
  %v665 = vadd.f32 %v480, %v664
  %v666 = vpop.f32.mrf.mxu0
  %667 = vmatprep.mubr.f32.mxu0 0.0
  %668 = vmatmul.mubr.f32.gmra.mxu0 %v549
  %v669 = vpop.f32.mrf.mxu0
  %v670 = vadd.f32 %v485, %v669
  %v671 = vpop.f32.mrf.mxu0
  %672 = vmatprep.mubr.f32.mxu0 0.0
  %673 = vmatmul.mubr.f32.gmra.mxu0 %v551
  %v674 = vpop.f32.mrf.mxu0
  %v675 = vadd.f32 %v490, %v674
  %v676 = vpop.f32.mrf.mxu0
  %677 = vdwg.mxu0
  %v690 = vcombine.high %v620, %v620
  %v691 = vcombine.high %v625, %v625
  %v692 = vcombine.high %v630, %v630
  %v693 = vcombine.high %v635, %v635
  %v694 = vcombine.high %v640, %v640
  %v695 = vcombine.high %v645, %v645
  %v696 = vcombine.high %v650, %v650
  %v697 = vcombine.high %v655, %v655
  %v698 = vcombine.high %v660, %v660
  %v699 = vcombine.high %v665, %v665
  %v700 = vcombine.high %v670, %v670
  %v701 = vcombine.high %v675, %v675
  %v714 = vld [vmem:[#allocation2 + $0x2] sm:$0xff]
  %v715 = vld [vmem:[#allocation2 + $0xa] sm:$0xf]
  %v716 = vld [vmem:[#allocation2 + $0x12] sm:$0xff]
  %v717 = vld [vmem:[#allocation2 + $0x1a] sm:$0xf]
  %v718 = vld [vmem:[#allocation2 + $0x22] sm:$0xff]
  %v719 = vld [vmem:[#allocation2 + $0x2a] sm:$0xf]
  %v720 = vld [vmem:[#allocation2 + $0x32] sm:$0xff]
  %v721 = vld [vmem:[#allocation2 + $0x3a] sm:$0xf]
  %v722 = vld [vmem:[#allocation2 + $0x42] sm:$0xff]
  %v723 = vld [vmem:[#allocation2 + $0x4a] sm:$0xf]
  %v724 = vld [vmem:[#allocation2 + $0x52] sm:$0xff]
  %v725 = vld [vmem:[#allocation2 + $0x5a] sm:$0xf]
  %v726 = vld [vmem:[#allocation2 + $0x62] sm:$0xff]
  %v727 = vld [vmem:[#allocation2 + $0x6a] sm:$0xf]
  %v728 = vld [vmem:[#allocation2 + $0x72] sm:$0xff]
  %v729 = vld [vmem:[#allocation2 + $0x7a] sm:$0xf]
  %v746 = vcombine.high %v714, %v714
  %v747 = vcombine.high %v716, %v716
  %v748 = vcombine.high %v718, %v718
  %v749 = vcombine.high %v720, %v720
  %v750 = vcombine.high %v722, %v722
  %v751 = vcombine.high %v724, %v724
  %v752 = vcombine.high %v726, %v726
  %v753 = vcombine.high %v728, %v728
  %v754 = vcombine.low %v714, %v746
  %v755 = vcombine.low %v715, %v716
  %v756 = vcombine.low %v747, %v717
  %v757 = vcombine.low %v718, %v748
  %v758 = vcombine.low %v719, %v720
  %v759 = vcombine.low %v749, %v721
  %v760 = vcombine.low %v722, %v750
  %v761 = vcombine.low %v723, %v724
  %v762 = vcombine.low %v751, %v725
  %v763 = vcombine.low %v726, %v752
  %v764 = vcombine.low %v727, %v728
  %v765 = vcombine.low %v753, %v729
  %v766 = vsel %vm247, %v754, 0
  %v768 = vsel %vm247, %v755, 0
  %v770 = vsel %vm247, %v756, 0
  %v772 = vsel %vm247, %v757, 0
  %v774 = vsel %vm247, %v758, 0
  %v776 = vsel %vm247, %v759, 0
  %v778 = vsel %vm247, %v760, 0
  %v780 = vsel %vm247, %v761, 0
  %v782 = vsel %vm247, %v762, 0
  %v784 = vsel %vm247, %v763, 0
  %v786 = vsel %vm247, %v764, 0
  %v788 = vsel %vm247, %v765, 0
  %790 = vmatprep.subr.mxu0 0.0
  %791 = vmatpush1.msra.mxu0 0.0
  %792 = vmatprep.subr.mxu0 0.0
  %793 = vmatpush1.msra.mxu0 0.0
  %794 = vmatprep.subr.mxu0 0.0
  %795 = vmatpush1.msra.mxu0 0.0
  %796 = vmatprep.subr.mxu0 0.0
  %797 = vmatpush1.msra.mxu0 0.0
  %798 = vmatprep.subr.mxu0 0.0
  %799 = vmatpush1.msra.mxu0 0.0
  %800 = vmatprep.subr.mxu0 0.0
  %801 = vmatpush1.msra.mxu0 0.0
  %802 = vmatprep.subr.mxu0 0.0
  %803 = vmatpush1.msra.mxu0 0.0
  %804 = vmatprep.subr.mxu0 0.0
  %805 = vmatpush1.msra.mxu0 0.0
  %806 = vmatprep.subr.mxu0 0.0
  %807 = vmatpush1.msra.mxu0 0.0
  %808 = vmatprep.subr.mxu0 0.0
  %809 = vmatpush1.msra.mxu0 0.0
  %810 = vmatprep.subr.mxu0 0.0
  %811 = vmatpush1.msra.mxu0 0.0
  %812 = vmatprep.subr.mxu0 0.0
  %813 = vmatpush1.msra.mxu0 0.0
  %814 = vmatprep.subr.mxu0 0.0
  %815 = vmatpush1.msra.mxu0 %v267
  %816 = vmatprep.subr.mxu0 0.0
  %817 = vmatpush1.msra.mxu0 %v266
  %818 = vmatprep.subr.mxu0 0.0
  %819 = vmatpush1.msra.mxu0 %v265
  %820 = vmatprep.subr.mxu0 0.0
  %821 = vmatpush1.msra.mxu0 %v264
  %822 = vmatprep.subr.mxu0 0.0
  %823 = vmatpush2.msra.mxu0 0.0
  %824 = vmatprep.subr.mxu0 0.0
  %825 = vmatpush2.msra.mxu0 0.0
  %826 = vmatprep.subr.mxu0 0.0
  %827 = vmatpush2.msra.mxu0 0.0
  %828 = vmatprep.subr.mxu0 0.0
  %829 = vmatpush2.msra.mxu0 0.0
  %830 = vmatprep.subr.mxu0 0.0
  %831 = vmatpush2.msra.mxu0 0.0
  %832 = vmatprep.subr.mxu0 0.0
  %833 = vmatpush2.msra.mxu0 0.0
  %834 = vmatprep.subr.mxu0 0.0
  %835 = vmatpush2.msra.mxu0 0.0
  %836 = vmatprep.subr.mxu0 0.0
  %837 = vmatpush2.msra.mxu0 0.0
  %838 = vmatprep.subr.mxu0 0.0
  %839 = vmatpush2.msra.mxu0 0.0
  %840 = vmatprep.subr.mxu0 0.0
  %841 = vmatpush2.msra.mxu0 0.0
  %842 = vmatprep.subr.mxu0 0.0
  %843 = vmatpush2.msra.mxu0 0.0
  %844 = vmatprep.subr.mxu0 0.0
  %845 = vmatpush2.msra.mxu0 0.0
  %846 = vmatprep.subr.mxu0 0.0
  %847 = vmatpush2.msra.mxu0 0.0
  %848 = vmatprep.subr.mxu0 0.0
  %849 = vmatpush2.msra.mxu0 0.0
  %850 = vmatprep.subr.mxu0 0.0
  %851 = vmatpush2.msra.mxu0 0.0
  %852 = vmatprep.subr.mxu0 0.0
  %853 = vmatpush2.msra.mxu0 0.0
  %854 = vmatprep.mubr.f32.mxu0 0.0
  %855 = vmatmul.mubr.f32.gmra.mxu0 %v766
  %v856 = vpop.f32.mrf.mxu0
  %v857 = vadd.f32 0.0, %v856
  %v858 = vpop.f32.mrf.mxu0
  %859 = vmatprep.mubr.f32.mxu0 0.0
  %860 = vmatmul.mubr.f32.gmra.mxu0 %v768
  %v861 = vpop.f32.mrf.mxu0
  %v862 = vadd.f32 0.0, %v861
  %v863 = vpop.f32.mrf.mxu0
  %864 = vmatprep.mubr.f32.mxu0 0.0
  %865 = vmatmul.mubr.f32.gmra.mxu0 %v770
  %v866 = vpop.f32.mrf.mxu0
  %v867 = vadd.f32 0.0, %v866
  %v868 = vpop.f32.mrf.mxu0
  %869 = vmatprep.mubr.f32.mxu0 0.0
  %870 = vmatmul.mubr.f32.gmra.mxu0 %v772
  %v871 = vpop.f32.mrf.mxu0
  %v872 = vadd.f32 0.0, %v871
  %v873 = vpop.f32.mrf.mxu0
  %874 = vmatprep.mubr.f32.mxu0 0.0
  %875 = vmatmul.mubr.f32.gmra.mxu0 %v774
  %v876 = vpop.f32.mrf.mxu0
  %v877 = vadd.f32 0.0, %v876
  %v878 = vpop.f32.mrf.mxu0
  %879 = vmatprep.mubr.f32.mxu0 0.0
  %880 = vmatmul.mubr.f32.gmra.mxu0 %v776
  %v881 = vpop.f32.mrf.mxu0
  %v882 = vadd.f32 0.0, %v881
  %v883 = vpop.f32.mrf.mxu0
  %884 = vmatprep.mubr.f32.mxu0 0.0
  %885 = vmatmul.mubr.f32.gmra.mxu0 %v778
  %v886 = vpop.f32.mrf.mxu0
  %v887 = vadd.f32 0.0, %v886
  %v888 = vpop.f32.mrf.mxu0
  %889 = vmatprep.mubr.f32.mxu0 0.0
  %890 = vmatmul.mubr.f32.gmra.mxu0 %v780
  %v891 = vpop.f32.mrf.mxu0
  %v892 = vadd.f32 0.0, %v891
  %v893 = vpop.f32.mrf.mxu0
  %894 = vmatprep.mubr.f32.mxu0 0.0
  %895 = vmatmul.mubr.f32.gmra.mxu0 %v782
  %v896 = vpop.f32.mrf.mxu0
  %v897 = vadd.f32 0.0, %v896
  %v898 = vpop.f32.mrf.mxu0
  %899 = vmatprep.mubr.f32.mxu0 0.0
  %900 = vmatmul.mubr.f32.gmra.mxu0 %v784
  %v901 = vpop.f32.mrf.mxu0
  %v902 = vadd.f32 0.0, %v901
  %v903 = vpop.f32.mrf.mxu0
  %904 = vmatprep.mubr.f32.mxu0 0.0
  %905 = vmatmul.mubr.f32.gmra.mxu0 %v786
  %v906 = vpop.f32.mrf.mxu0
  %v907 = vadd.f32 0.0, %v906
  %v908 = vpop.f32.mrf.mxu0
  %909 = vmatprep.mubr.f32.mxu0 0.0
  %910 = vmatmul.mubr.f32.gmra.mxu0 %v788
  %v911 = vpop.f32.mrf.mxu0
  %v912 = vadd.f32 0.0, %v911
  %v913 = vpop.f32.mrf.mxu0
  %914 = vdwg.mxu0
  %v927 = vcombine.high %v857, %v857
  %v928 = vcombine.high %v862, %v862
  %v929 = vcombine.high %v867, %v867
  %v930 = vcombine.high %v872, %v872
  %v931 = vcombine.high %v877, %v877
  %v932 = vcombine.high %v882, %v882
  %v933 = vcombine.high %v887, %v887
  %v934 = vcombine.high %v892, %v892
  %v935 = vcombine.high %v897, %v897
  %v936 = vcombine.high %v902, %v902
  %v937 = vcombine.high %v907, %v907
  %v938 = vcombine.high %v912, %v912
  %v951 = vadd.f32 %v620, %v857
  %v952 = vadd.f32 %v690, %v927
  %v953 = vadd.f32 %v625, %v862
  %v954 = vadd.f32 %v691, %v928
  %v955 = vadd.f32 %v630, %v867
  %v956 = vadd.f32 %v692, %v929
  %v957 = vadd.f32 %v635, %v872
  %v958 = vadd.f32 %v693, %v930
  %v959 = vadd.f32 %v640, %v877
  %v960 = vadd.f32 %v694, %v931
  %v961 = vadd.f32 %v645, %v882
  %v962 = vadd.f32 %v695, %v932
  %v963 = vadd.f32 %v650, %v887
  %v964 = vadd.f32 %v696, %v933
  %v965 = vadd.f32 %v655, %v892
  %v966 = vadd.f32 %v697, %v934
  %v967 = vadd.f32 %v660, %v897
  %v968 = vadd.f32 %v698, %v935
  %v969 = vadd.f32 %v665, %v902
  %v970 = vadd.f32 %v699, %v936
  %v971 = vadd.f32 %v670, %v907
  %v972 = vadd.f32 %v700, %v937
  %v973 = vadd.f32 %v675, %v912
  %v974 = vadd.f32 %v701, %v938
  %v975 = vld [vmem:[#allocation2 + $0x3] sm:$0xff]
  %v976 = vld [vmem:[#allocation2 + $0xb] sm:$0xf]
  %v977 = vld [vmem:[#allocation2 + $0x13] sm:$0xff]
  %v978 = vld [vmem:[#allocation2 + $0x1b] sm:$0xf]
  %v979 = vld [vmem:[#allocation2 + $0x23] sm:$0xff]
  %v980 = vld [vmem:[#allocation2 + $0x2b] sm:$0xf]
  %v981 = vld [vmem:[#allocation2 + $0x33] sm:$0xff]
  %v982 = vld [vmem:[#allocation2 + $0x3b] sm:$0xf]
  %v983 = vld [vmem:[#allocation2 + $0x43] sm:$0xff]
  %v984 = vld [vmem:[#allocation2 + $0x4b] sm:$0xf]
  %v985 = vld [vmem:[#allocation2 + $0x53] sm:$0xff]
  %v986 = vld [vmem:[#allocation2 + $0x5b] sm:$0xf]
  %v987 = vld [vmem:[#allocation2 + $0x63] sm:$0xff]
  %v988 = vld [vmem:[#allocation2 + $0x6b] sm:$0xf]
  %v989 = vld [vmem:[#allocation2 + $0x73] sm:$0xff]
  %v990 = vld [vmem:[#allocation2 + $0x7b] sm:$0xf]
  %v1007 = vcombine.high %v975, %v975
  %v1008 = vcombine.high %v977, %v977
  %v1009 = vcombine.high %v979, %v979
  %v1010 = vcombine.high %v981, %v981
  %v1011 = vcombine.high %v983, %v983
  %v1012 = vcombine.high %v985, %v985
  %v1013 = vcombine.high %v987, %v987
  %v1014 = vcombine.high %v989, %v989
  %v1015 = vcombine.low %v975, %v1007
  %v1016 = vcombine.low %v976, %v977
  %v1017 = vcombine.low %v1008, %v978
  %v1018 = vcombine.low %v979, %v1009
  %v1019 = vcombine.low %v980, %v981
  %v1020 = vcombine.low %v1010, %v982
  %v1021 = vcombine.low %v983, %v1011
  %v1022 = vcombine.low %v984, %v985
  %v1023 = vcombine.low %v1012, %v986
  %v1024 = vcombine.low %v987, %v1013
  %v1025 = vcombine.low %v988, %v989
  %v1026 = vcombine.low %v1014, %v990
  %v1027 = vsel %vm247, %v1015, 0
  %v1029 = vsel %vm247, %v1016, 0
  %v1031 = vsel %vm247, %v1017, 0
  %v1033 = vsel %vm247, %v1018, 0
  %v1035 = vsel %vm247, %v1019, 0
  %v1037 = vsel %vm247, %v1020, 0
  %v1039 = vsel %vm247, %v1021, 0
  %v1041 = vsel %vm247, %v1022, 0
  %v1043 = vsel %vm247, %v1023, 0
  %v1045 = vsel %vm247, %v1024, 0
  %v1047 = vsel %vm247, %v1025, 0
  %v1049 = vsel %vm247, %v1026, 0
  %1051 = vmatprep.subr.mxu0 0.0
  %1052 = vmatpush1.msra.mxu0 0.0
  %1053 = vmatprep.subr.mxu0 0.0
  %1054 = vmatpush1.msra.mxu0 0.0
  %1055 = vmatprep.subr.mxu0 0.0
  %1056 = vmatpush1.msra.mxu0 0.0
  %1057 = vmatprep.subr.mxu0 0.0
  %1058 = vmatpush1.msra.mxu0 0.0
  %1059 = vmatprep.subr.mxu0 0.0
  %1060 = vmatpush1.msra.mxu0 0.0
  %1061 = vmatprep.subr.mxu0 0.0
  %1062 = vmatpush1.msra.mxu0 0.0
  %1063 = vmatprep.subr.mxu0 0.0
  %1064 = vmatpush1.msra.mxu0 0.0
  %1065 = vmatprep.subr.mxu0 0.0
  %1066 = vmatpush1.msra.mxu0 0.0
  %1067 = vmatprep.subr.mxu0 0.0
  %1068 = vmatpush1.msra.mxu0 0.0
  %1069 = vmatprep.subr.mxu0 0.0
  %1070 = vmatpush1.msra.mxu0 0.0
  %1071 = vmatprep.subr.mxu0 0.0
  %1072 = vmatpush1.msra.mxu0 0.0
  %1073 = vmatprep.subr.mxu0 0.0
  %1074 = vmatpush1.msra.mxu0 0.0
  %1075 = vmatprep.subr.mxu0 0.0
  %1076 = vmatpush1.msra.mxu0 %v271
  %1077 = vmatprep.subr.mxu0 0.0
  %1078 = vmatpush1.msra.mxu0 %v270
  %1079 = vmatprep.subr.mxu0 0.0
  %1080 = vmatpush1.msra.mxu0 %v269
  %1081 = vmatprep.subr.mxu0 0.0
  %1082 = vmatpush1.msra.mxu0 %v268
  %1083 = vmatprep.subr.mxu0 0.0
  %1084 = vmatpush2.msra.mxu0 0.0
  %1085 = vmatprep.subr.mxu0 0.0
  %1086 = vmatpush2.msra.mxu0 0.0
  %1087 = vmatprep.subr.mxu0 0.0
  %1088 = vmatpush2.msra.mxu0 0.0
  %1089 = vmatprep.subr.mxu0 0.0
  %1090 = vmatpush2.msra.mxu0 0.0
  %1091 = vmatprep.subr.mxu0 0.0
  %1092 = vmatpush2.msra.mxu0 0.0
  %1093 = vmatprep.subr.mxu0 0.0
  %1094 = vmatpush2.msra.mxu0 0.0
  %1095 = vmatprep.subr.mxu0 0.0
  %1096 = vmatpush2.msra.mxu0 0.0
  %1097 = vmatprep.subr.mxu0 0.0
  %1098 = vmatpush2.msra.mxu0 0.0
  %1099 = vmatprep.subr.mxu0 0.0
  %1100 = vmatpush2.msra.mxu0 0.0
  %1101 = vmatprep.subr.mxu0 0.0
  %1102 = vmatpush2.msra.mxu0 0.0
  %1103 = vmatprep.subr.mxu0 0.0
  %1104 = vmatpush2.msra.mxu0 0.0
  %1105 = vmatprep.subr.mxu0 0.0
  %1106 = vmatpush2.msra.mxu0 0.0
  %1107 = vmatprep.subr.mxu0 0.0
  %1108 = vmatpush2.msra.mxu0 0.0
  %1109 = vmatprep.subr.mxu0 0.0
  %1110 = vmatpush2.msra.mxu0 0.0
  %1111 = vmatprep.subr.mxu0 0.0
  %1112 = vmatpush2.msra.mxu0 0.0
  %1113 = vmatprep.subr.mxu0 0.0
  %1114 = vmatpush2.msra.mxu0 0.0
  %1115 = vmatprep.mubr.f32.mxu0 0.0
  %1116 = vmatmul.mubr.f32.gmra.mxu0 %v1027
  %v1117 = vpop.f32.mrf.mxu0
  %v1118 = vadd.f32 0.0, %v1117
  %v1119 = vpop.f32.mrf.mxu0
  %1120 = vmatprep.mubr.f32.mxu0 0.0
  %1121 = vmatmul.mubr.f32.gmra.mxu0 %v1029
  %v1122 = vpop.f32.mrf.mxu0
  %v1123 = vadd.f32 0.0, %v1122
  %v1124 = vpop.f32.mrf.mxu0
  %1125 = vmatprep.mubr.f32.mxu0 0.0
  %1126 = vmatmul.mubr.f32.gmra.mxu0 %v1031
  %v1127 = vpop.f32.mrf.mxu0
  %v1128 = vadd.f32 0.0, %v1127
  %v1129 = vpop.f32.mrf.mxu0
  %1130 = vmatprep.mubr.f32.mxu0 0.0
  %1131 = vmatmul.mubr.f32.gmra.mxu0 %v1033
  %v1132 = vpop.f32.mrf.mxu0
  %v1133 = vadd.f32 0.0, %v1132
  %v1134 = vpop.f32.mrf.mxu0
  %1135 = vmatprep.mubr.f32.mxu0 0.0
  %1136 = vmatmul.mubr.f32.gmra.mxu0 %v1035
  %v1137 = vpop.f32.mrf.mxu0
  %v1138 = vadd.f32 0.0, %v1137
  %v1139 = vpop.f32.mrf.mxu0
  %1140 = vmatprep.mubr.f32.mxu0 0.0
  %1141 = vmatmul.mubr.f32.gmra.mxu0 %v1037
  %v1142 = vpop.f32.mrf.mxu0
  %v1143 = vadd.f32 0.0, %v1142
  %v1144 = vpop.f32.mrf.mxu0
  %1145 = vmatprep.mubr.f32.mxu0 0.0
  %1146 = vmatmul.mubr.f32.gmra.mxu0 %v1039
  %v1147 = vpop.f32.mrf.mxu0
  %v1148 = vadd.f32 0.0, %v1147
  %v1149 = vpop.f32.mrf.mxu0
  %1150 = vmatprep.mubr.f32.mxu0 0.0
  %1151 = vmatmul.mubr.f32.gmra.mxu0 %v1041
  %v1152 = vpop.f32.mrf.mxu0
  %v1153 = vadd.f32 0.0, %v1152
  %v1154 = vpop.f32.mrf.mxu0
  %1155 = vmatprep.mubr.f32.mxu0 0.0
  %1156 = vmatmul.mubr.f32.gmra.mxu0 %v1043
  %v1157 = vpop.f32.mrf.mxu0
  %v1158 = vadd.f32 0.0, %v1157
  %v1159 = vpop.f32.mrf.mxu0
  %1160 = vmatprep.mubr.f32.mxu0 0.0
  %1161 = vmatmul.mubr.f32.gmra.mxu0 %v1045
  %v1162 = vpop.f32.mrf.mxu0
  %v1163 = vadd.f32 0.0, %v1162
  %v1164 = vpop.f32.mrf.mxu0
  %1165 = vmatprep.mubr.f32.mxu0 0.0
  %1166 = vmatmul.mubr.f32.gmra.mxu0 %v1047
  %v1167 = vpop.f32.mrf.mxu0
  %v1168 = vadd.f32 0.0, %v1167
  %v1169 = vpop.f32.mrf.mxu0
  %1170 = vmatprep.mubr.f32.mxu0 0.0
  %1171 = vmatmul.mubr.f32.gmra.mxu0 %v1049
  %v1172 = vpop.f32.mrf.mxu0
  %v1173 = vadd.f32 0.0, %v1172
  %v1174 = vpop.f32.mrf.mxu0
  %1175 = vdwg.mxu0
  %v1188 = vcombine.high %v1118, %v1118
  %v1189 = vcombine.high %v1123, %v1123
  %v1190 = vcombine.high %v1128, %v1128
  %v1191 = vcombine.high %v1133, %v1133
  %v1192 = vcombine.high %v1138, %v1138
  %v1193 = vcombine.high %v1143, %v1143
  %v1194 = vcombine.high %v1148, %v1148
  %v1195 = vcombine.high %v1153, %v1153
  %v1196 = vcombine.high %v1158, %v1158
  %v1197 = vcombine.high %v1163, %v1163
  %v1198 = vcombine.high %v1168, %v1168
  %v1199 = vcombine.high %v1173, %v1173
  %v1212 = vadd.f32 %v951, %v1118
  %v1213 = vadd.f32 %v952, %v1188
  %v1214 = vadd.f32 %v953, %v1123
  %v1215 = vadd.f32 %v954, %v1189
  %v1216 = vadd.f32 %v955, %v1128
  %v1217 = vadd.f32 %v956, %v1190
  %v1218 = vadd.f32 %v957, %v1133
  %v1219 = vadd.f32 %v958, %v1191
  %v1220 = vadd.f32 %v959, %v1138
  %v1221 = vadd.f32 %v960, %v1192
  %v1222 = vadd.f32 %v961, %v1143
  %v1223 = vadd.f32 %v962, %v1193
  %v1224 = vadd.f32 %v963, %v1148
  %v1225 = vadd.f32 %v964, %v1194
  %v1226 = vadd.f32 %v965, %v1153
  %v1227 = vadd.f32 %v966, %v1195
  %v1228 = vadd.f32 %v967, %v1158
  %v1229 = vadd.f32 %v968, %v1196
  %v1230 = vadd.f32 %v969, %v1163
  %v1231 = vadd.f32 %v970, %v1197
  %v1232 = vadd.f32 %v971, %v1168
  %v1233 = vadd.f32 %v972, %v1198
  %v1234 = vadd.f32 %v973, %v1173
  %v1235 = vadd.f32 %v974, %v1199
  %v1236 = vld [vmem:[#allocation2 + $0x4] sm:$0xff]
  %v1237 = vld [vmem:[#allocation2 + $0xc] sm:$0xf]
  %v1238 = vld [vmem:[#allocation2 + $0x14] sm:$0xff]
  %v1239 = vld [vmem:[#allocation2 + $0x1c] sm:$0xf]
  %v1240 = vld [vmem:[#allocation2 + $0x24] sm:$0xff]
  %v1241 = vld [vmem:[#allocation2 + $0x2c] sm:$0xf]
  %v1242 = vld [vmem:[#allocation2 + $0x34] sm:$0xff]
  %v1243 = vld [vmem:[#allocation2 + $0x3c] sm:$0xf]
  %v1244 = vld [vmem:[#allocation2 + $0x44] sm:$0xff]
  %v1245 = vld [vmem:[#allocation2 + $0x4c] sm:$0xf]
  %v1246 = vld [vmem:[#allocation2 + $0x54] sm:$0xff]
  %v1247 = vld [vmem:[#allocation2 + $0x5c] sm:$0xf]
  %v1248 = vld [vmem:[#allocation2 + $0x64] sm:$0xff]
  %v1249 = vld [vmem:[#allocation2 + $0x6c] sm:$0xf]
  %v1250 = vld [vmem:[#allocation2 + $0x74] sm:$0xff]
  %v1251 = vld [vmem:[#allocation2 + $0x7c] sm:$0xf]
  %v1268 = vcombine.high %v1236, %v1236
  %v1269 = vcombine.high %v1238, %v1238
  %v1270 = vcombine.high %v1240, %v1240
  %v1271 = vcombine.high %v1242, %v1242
  %v1272 = vcombine.high %v1244, %v1244
  %v1273 = vcombine.high %v1246, %v1246
  %v1274 = vcombine.high %v1248, %v1248
  %v1275 = vcombine.high %v1250, %v1250
  %v1276 = vcombine.low %v1236, %v1268
  %v1277 = vcombine.low %v1237, %v1238
  %v1278 = vcombine.low %v1269, %v1239
  %v1279 = vcombine.low %v1240, %v1270
  %v1280 = vcombine.low %v1241, %v1242
  %v1281 = vcombine.low %v1271, %v1243
  %v1282 = vcombine.low %v1244, %v1272
  %v1283 = vcombine.low %v1245, %v1246
  %v1284 = vcombine.low %v1273, %v1247
  %v1285 = vcombine.low %v1248, %v1274
  %v1286 = vcombine.low %v1249, %v1250
  %v1287 = vcombine.low %v1275, %v1251
  %v1288 = vsel %vm247, %v1276, 0
  %v1290 = vsel %vm247, %v1277, 0
  %v1292 = vsel %vm247, %v1278, 0
  %v1294 = vsel %vm247, %v1279, 0
  %v1296 = vsel %vm247, %v1280, 0
  %v1298 = vsel %vm247, %v1281, 0
  %v1300 = vsel %vm247, %v1282, 0
  %v1302 = vsel %vm247, %v1283, 0
  %v1304 = vsel %vm247, %v1284, 0
  %v1306 = vsel %vm247, %v1285, 0
  %v1308 = vsel %vm247, %v1286, 0
  %v1310 = vsel %vm247, %v1287, 0
  %1312 = vmatprep.subr.mxu0 0.0
  %1313 = vmatpush1.msra.mxu0 0.0
  %1314 = vmatprep.subr.mxu0 0.0
  %1315 = vmatpush1.msra.mxu0 0.0
  %1316 = vmatprep.subr.mxu0 0.0
  %1317 = vmatpush1.msra.mxu0 0.0
  %1318 = vmatprep.subr.mxu0 0.0
  %1319 = vmatpush1.msra.mxu0 0.0
  %1320 = vmatprep.subr.mxu0 0.0
  %1321 = vmatpush1.msra.mxu0 0.0
  %1322 = vmatprep.subr.mxu0 0.0
  %1323 = vmatpush1.msra.mxu0 0.0
  %1324 = vmatprep.subr.mxu0 0.0
  %1325 = vmatpush1.msra.mxu0 0.0
  %1326 = vmatprep.subr.mxu0 0.0
  %1327 = vmatpush1.msra.mxu0 0.0
  %1328 = vmatprep.subr.mxu0 0.0
  %1329 = vmatpush1.msra.mxu0 0.0
  %1330 = vmatprep.subr.mxu0 0.0
  %1331 = vmatpush1.msra.mxu0 0.0
  %1332 = vmatprep.subr.mxu0 0.0
  %1333 = vmatpush1.msra.mxu0 0.0
  %1334 = vmatprep.subr.mxu0 0.0
  %1335 = vmatpush1.msra.mxu0 0.0
  %1336 = vmatprep.subr.mxu0 0.0
  %1337 = vmatpush1.msra.mxu0 %v275
  %1338 = vmatprep.subr.mxu0 0.0
  %1339 = vmatpush1.msra.mxu0 %v274
  %1340 = vmatprep.subr.mxu0 0.0
  %1341 = vmatpush1.msra.mxu0 %v273
  %1342 = vmatprep.subr.mxu0 0.0
  %1343 = vmatpush1.msra.mxu0 %v272
  %1344 = vmatprep.subr.mxu0 0.0
  %1345 = vmatpush2.msra.mxu0 0.0
  %1346 = vmatprep.subr.mxu0 0.0
  %1347 = vmatpush2.msra.mxu0 0.0
  %1348 = vmatprep.subr.mxu0 0.0
  %1349 = vmatpush2.msra.mxu0 0.0
  %1350 = vmatprep.subr.mxu0 0.0
  %1351 = vmatpush2.msra.mxu0 0.0
  %1352 = vmatprep.subr.mxu0 0.0
  %1353 = vmatpush2.msra.mxu0 0.0
  %1354 = vmatprep.subr.mxu0 0.0
  %1355 = vmatpush2.msra.mxu0 0.0
  %1356 = vmatprep.subr.mxu0 0.0
  %1357 = vmatpush2.msra.mxu0 0.0
  %1358 = vmatprep.subr.mxu0 0.0
  %1359 = vmatpush2.msra.mxu0 0.0
  %1360 = vmatprep.subr.mxu0 0.0
  %1361 = vmatpush2.msra.mxu0 0.0
  %1362 = vmatprep.subr.mxu0 0.0
  %1363 = vmatpush2.msra.mxu0 0.0
  %1364 = vmatprep.subr.mxu0 0.0
  %1365 = vmatpush2.msra.mxu0 0.0
  %1366 = vmatprep.subr.mxu0 0.0
  %1367 = vmatpush2.msra.mxu0 0.0
  %1368 = vmatprep.subr.mxu0 0.0
  %1369 = vmatpush2.msra.mxu0 0.0
  %1370 = vmatprep.subr.mxu0 0.0
  %1371 = vmatpush2.msra.mxu0 0.0
  %1372 = vmatprep.subr.mxu0 0.0
  %1373 = vmatpush2.msra.mxu0 0.0
  %1374 = vmatprep.subr.mxu0 0.0
  %1375 = vmatpush2.msra.mxu0 0.0
  %1376 = vmatprep.mubr.f32.mxu0 0.0
  %1377 = vmatmul.mubr.f32.gmra.mxu0 %v1288
  %v1378 = vpop.f32.mrf.mxu0
  %v1379 = vadd.f32 0.0, %v1378
  %v1380 = vpop.f32.mrf.mxu0
  %1381 = vmatprep.mubr.f32.mxu0 0.0
  %1382 = vmatmul.mubr.f32.gmra.mxu0 %v1290
  %v1383 = vpop.f32.mrf.mxu0
  %v1384 = vadd.f32 0.0, %v1383
  %v1385 = vpop.f32.mrf.mxu0
  %1386 = vmatprep.mubr.f32.mxu0 0.0
  %1387 = vmatmul.mubr.f32.gmra.mxu0 %v1292
  %v1388 = vpop.f32.mrf.mxu0
  %v1389 = vadd.f32 0.0, %v1388
  %v1390 = vpop.f32.mrf.mxu0
  %1391 = vmatprep.mubr.f32.mxu0 0.0
  %1392 = vmatmul.mubr.f32.gmra.mxu0 %v1294
  %v1393 = vpop.f32.mrf.mxu0
  %v1394 = vadd.f32 0.0, %v1393
  %v1395 = vpop.f32.mrf.mxu0
  %1396 = vmatprep.mubr.f32.mxu0 0.0
  %1397 = vmatmul.mubr.f32.gmra.mxu0 %v1296
  %v1398 = vpop.f32.mrf.mxu0
  %v1399 = vadd.f32 0.0, %v1398
  %v1400 = vpop.f32.mrf.mxu0
  %1401 = vmatprep.mubr.f32.mxu0 0.0
  %1402 = vmatmul.mubr.f32.gmra.mxu0 %v1298
  %v1403 = vpop.f32.mrf.mxu0
  %v1404 = vadd.f32 0.0, %v1403
  %v1405 = vpop.f32.mrf.mxu0
  %1406 = vmatprep.mubr.f32.mxu0 0.0
  %1407 = vmatmul.mubr.f32.gmra.mxu0 %v1300
  %v1408 = vpop.f32.mrf.mxu0
  %v1409 = vadd.f32 0.0, %v1408
  %v1410 = vpop.f32.mrf.mxu0
  %1411 = vmatprep.mubr.f32.mxu0 0.0
  %1412 = vmatmul.mubr.f32.gmra.mxu0 %v1302
  %v1413 = vpop.f32.mrf.mxu0
  %v1414 = vadd.f32 0.0, %v1413
  %v1415 = vpop.f32.mrf.mxu0
  %1416 = vmatprep.mubr.f32.mxu0 0.0
  %1417 = vmatmul.mubr.f32.gmra.mxu0 %v1304
  %v1418 = vpop.f32.mrf.mxu0
  %v1419 = vadd.f32 0.0, %v1418
  %v1420 = vpop.f32.mrf.mxu0
  %1421 = vmatprep.mubr.f32.mxu0 0.0
  %1422 = vmatmul.mubr.f32.gmra.mxu0 %v1306
  %v1423 = vpop.f32.mrf.mxu0
  %v1424 = vadd.f32 0.0, %v1423
  %v1425 = vpop.f32.mrf.mxu0
  %1426 = vmatprep.mubr.f32.mxu0 0.0
  %1427 = vmatmul.mubr.f32.gmra.mxu0 %v1308
  %v1428 = vpop.f32.mrf.mxu0
  %v1429 = vadd.f32 0.0, %v1428
  %v1430 = vpop.f32.mrf.mxu0
  %1431 = vmatprep.mubr.f32.mxu0 0.0
  %1432 = vmatmul.mubr.f32.gmra.mxu0 %v1310
  %v1433 = vpop.f32.mrf.mxu0
  %v1434 = vadd.f32 0.0, %v1433
  %v1435 = vpop.f32.mrf.mxu0
  %1436 = vdwg.mxu0
  %v1449 = vcombine.high %v1379, %v1379
  %v1450 = vcombine.high %v1384, %v1384
  %v1451 = vcombine.high %v1389, %v1389
  %v1452 = vcombine.high %v1394, %v1394
  %v1453 = vcombine.high %v1399, %v1399
  %v1454 = vcombine.high %v1404, %v1404
  %v1455 = vcombine.high %v1409, %v1409
  %v1456 = vcombine.high %v1414, %v1414
  %v1457 = vcombine.high %v1419, %v1419
  %v1458 = vcombine.high %v1424, %v1424
  %v1459 = vcombine.high %v1429, %v1429
  %v1460 = vcombine.high %v1434, %v1434
  %v1473 = vadd.f32 %v1212, %v1379
  %v1474 = vadd.f32 %v1213, %v1449
  %v1475 = vadd.f32 %v1214, %v1384
  %v1476 = vadd.f32 %v1215, %v1450
  %v1477 = vadd.f32 %v1216, %v1389
  %v1478 = vadd.f32 %v1217, %v1451
  %v1479 = vadd.f32 %v1218, %v1394
  %v1480 = vadd.f32 %v1219, %v1452
  %v1481 = vadd.f32 %v1220, %v1399
  %v1482 = vadd.f32 %v1221, %v1453
  %v1483 = vadd.f32 %v1222, %v1404
  %v1484 = vadd.f32 %v1223, %v1454
  %v1485 = vadd.f32 %v1224, %v1409
  %v1486 = vadd.f32 %v1225, %v1455
  %v1487 = vadd.f32 %v1226, %v1414
  %v1488 = vadd.f32 %v1227, %v1456
  %v1489 = vadd.f32 %v1228, %v1419
  %v1490 = vadd.f32 %v1229, %v1457
  %v1491 = vadd.f32 %v1230, %v1424
  %v1492 = vadd.f32 %v1231, %v1458
  %v1493 = vadd.f32 %v1232, %v1429
  %v1494 = vadd.f32 %v1233, %v1459
  %v1495 = vadd.f32 %v1234, %v1434
  %v1496 = vadd.f32 %v1235, %v1460
  %v1497 = vld [vmem:[%s3] sm:$0x1]
  %v1499 = vlaneseq
  %v1500 = vshrl.u32 %v1499, 7
  %v1501 = vsub.s32 0, %v1500
  %v1502 = vrot.slane %v1497, %v1501
  %v1504 = vcombine.high %v1502, %v1502
  %v1506 = vadd.f32 %v1473, %v1502
  %v1507 = vadd.f32 %v1474, %v1504
  %v1508 = vadd.f32 %v1475, %v1502
  %v1509 = vadd.f32 %v1476, %v1502
  %v1510 = vadd.f32 %v1477, %v1504
  %v1511 = vadd.f32 %v1478, %v1502
  %v1512 = vadd.f32 %v1479, %v1502
  %v1513 = vadd.f32 %v1480, %v1504
  %v1514 = vadd.f32 %v1481, %v1502
  %v1515 = vadd.f32 %v1482, %v1502
  %v1516 = vadd.f32 %v1483, %v1504
  %v1517 = vadd.f32 %v1484, %v1502
  %v1518 = vadd.f32 %v1485, %v1502
  %v1519 = vadd.f32 %v1486, %v1504
  %v1520 = vadd.f32 %v1487, %v1502
  %v1521 = vadd.f32 %v1488, %v1502
  %v1522 = vadd.f32 %v1489, %v1504
  %v1523 = vadd.f32 %v1490, %v1502
  %v1524 = vadd.f32 %v1491, %v1502
  %v1525 = vadd.f32 %v1492, %v1504
  %v1526 = vadd.f32 %v1493, %v1502
  %v1527 = vadd.f32 %v1494, %v1502
  %v1528 = vadd.f32 %v1495, %v1504
  %v1529 = vadd.f32 %v1496, %v1502
  %v1530 = vmax.f32 %v1506, 0.0
  %v1531 = vmax.f32 %v1507, 0.0
  %v1532 = vmax.f32 %v1508, 0.0
  %v1533 = vmax.f32 %v1509, 0.0
  %v1534 = vmax.f32 %v1510, 0.0
  %v1535 = vmax.f32 %v1511, 0.0
  %v1536 = vmax.f32 %v1512, 0.0
  %v1537 = vmax.f32 %v1513, 0.0
  %v1538 = vmax.f32 %v1514, 0.0
  %v1539 = vmax.f32 %v1515, 0.0
  %v1540 = vmax.f32 %v1516, 0.0
  %v1541 = vmax.f32 %v1517, 0.0
  %v1542 = vmax.f32 %v1518, 0.0
  %v1543 = vmax.f32 %v1519, 0.0
  %v1544 = vmax.f32 %v1520, 0.0
  %v1545 = vmax.f32 %v1521, 0.0
  %v1546 = vmax.f32 %v1522, 0.0
  %v1547 = vmax.f32 %v1523, 0.0
  %v1548 = vmax.f32 %v1524, 0.0
  %v1549 = vmax.f32 %v1525, 0.0
  %v1550 = vmax.f32 %v1526, 0.0
  %v1551 = vmax.f32 %v1527, 0.0
  %v1552 = vmax.f32 %v1528, 0.0
  %v1553 = vmax.f32 %v1529, 0.0
  %v1554 = vld [vmem:[%s4] sm:$0xff]
  %v1555 = vld [vmem:[%s4 + $0x8] sm:$0xf]
  %v1557 = vcombine.high %v1554, %v1554
  %v1559 = vmul.f32 %v1530, %v1554
  %v1560 = vmul.f32 %v1531, %v1557
  %v1561 = vmul.f32 %v1532, %v1555
  %v1562 = vmul.f32 %v1533, %v1554
  %v1563 = vmul.f32 %v1534, %v1557
  %v1564 = vmul.f32 %v1535, %v1555
  %v1565 = vmul.f32 %v1536, %v1554
  %v1566 = vmul.f32 %v1537, %v1557
  %v1567 = vmul.f32 %v1538, %v1555
  %v1568 = vmul.f32 %v1539, %v1554
  %v1569 = vmul.f32 %v1540, %v1557
  %v1570 = vmul.f32 %v1541, %v1555
  %v1571 = vmul.f32 %v1542, %v1554
  %v1572 = vmul.f32 %v1543, %v1557
  %v1573 = vmul.f32 %v1544, %v1555
  %v1574 = vmul.f32 %v1545, %v1554
  %v1575 = vmul.f32 %v1546, %v1557
  %v1576 = vmul.f32 %v1547, %v1555
  %v1577 = vmul.f32 %v1548, %v1554
  %v1578 = vmul.f32 %v1549, %v1557
  %v1579 = vmul.f32 %v1550, %v1555
  %v1580 = vmul.f32 %v1551, %v1554
  %v1581 = vmul.f32 %v1552, %v1557
  %v1582 = vmul.f32 %v1553, %v1555
  %v1599 = vcombine.low %v1559, %v1560
  %v1600 = vcombine.low %v1562, %v1563
  %v1601 = vcombine.low %v1565, %v1566
  %v1602 = vcombine.low %v1568, %v1569
  %v1603 = vcombine.low %v1571, %v1572
  %v1604 = vcombine.low %v1574, %v1575
  %v1605 = vcombine.low %v1577, %v1578
  %v1606 = vcombine.low %v1580, %v1581
  %vm1615 = vcmask 195584
  %v1616 = vsel %vm1615, %v1599, -inf
  %vm1617 = vcmask 191488
  %v1618 = vsel %vm1617, %v1561, -inf
  %v1619 = vmax.f32 %v1616, %v1618
  %v1620 = vrot.slane %v1619, 4
  %v1621 = vmax.f32 %v1619, %v1620
  %v1622 = vrot.slane %v1621, 2
  %v1623 = vmax.f32 %v1621, %v1622
  %v1624 = vrot.slane %v1623, 1
  %v1625 = vmax.f32 %v1623, %v1624
  %v1626 = vsel %vm1615, %v1600, -inf
  %v1627 = vsel %vm1617, %v1564, -inf
  %v1628 = vmax.f32 %v1626, %v1627
  %v1629 = vrot.slane %v1628, 4
  %v1630 = vmax.f32 %v1628, %v1629
  %v1631 = vrot.slane %v1630, 2
  %v1632 = vmax.f32 %v1630, %v1631
  %v1633 = vrot.slane %v1632, 1
  %v1634 = vmax.f32 %v1632, %v1633
  %v1635 = vsel %vm1615, %v1601, -inf
  %v1636 = vsel %vm1617, %v1567, -inf
  %v1637 = vmax.f32 %v1635, %v1636
  %v1638 = vrot.slane %v1637, 4
  %v1639 = vmax.f32 %v1637, %v1638
  %v1640 = vrot.slane %v1639, 2
  %v1641 = vmax.f32 %v1639, %v1640
  %v1642 = vrot.slane %v1641, 1
  %v1643 = vmax.f32 %v1641, %v1642
  %v1644 = vsel %vm1615, %v1602, -inf
  %v1645 = vsel %vm1617, %v1570, -inf
  %v1646 = vmax.f32 %v1644, %v1645
  %v1647 = vrot.slane %v1646, 4
  %v1648 = vmax.f32 %v1646, %v1647
  %v1649 = vrot.slane %v1648, 2
  %v1650 = vmax.f32 %v1648, %v1649
  %v1651 = vrot.slane %v1650, 1
  %v1652 = vmax.f32 %v1650, %v1651
  %v1653 = vsel %vm1615, %v1603, -inf
  %v1654 = vsel %vm1617, %v1573, -inf
  %v1655 = vmax.f32 %v1653, %v1654
  %v1656 = vrot.slane %v1655, 4
  %v1657 = vmax.f32 %v1655, %v1656
  %v1658 = vrot.slane %v1657, 2
  %v1659 = vmax.f32 %v1657, %v1658
  %v1660 = vrot.slane %v1659, 1
  %v1661 = vmax.f32 %v1659, %v1660
  %v1662 = vsel %vm1615, %v1604, -inf
  %v1663 = vsel %vm1617, %v1576, -inf
  %v1664 = vmax.f32 %v1662, %v1663
  %v1665 = vrot.slane %v1664, 4
  %v1666 = vmax.f32 %v1664, %v1665
  %v1667 = vrot.slane %v1666, 2
  %v1668 = vmax.f32 %v1666, %v1667
  %v1669 = vrot.slane %v1668, 1
  %v1670 = vmax.f32 %v1668, %v1669
  %v1671 = vsel %vm1615, %v1605, -inf
  %v1672 = vsel %vm1617, %v1579, -inf
  %v1673 = vmax.f32 %v1671, %v1672
  %v1674 = vrot.slane %v1673, 4
  %v1675 = vmax.f32 %v1673, %v1674
  %v1676 = vrot.slane %v1675, 2
  %v1677 = vmax.f32 %v1675, %v1676
  %v1678 = vrot.slane %v1677, 1
  %v1679 = vmax.f32 %v1677, %v1678
  %v1680 = vsel %vm1615, %v1606, -inf
  %v1681 = vsel %vm1617, %v1582, -inf
  %v1682 = vmax.f32 %v1680, %v1681
  %v1683 = vrot.slane %v1682, 4
  %v1684 = vmax.f32 %v1682, %v1683
  %v1685 = vrot.slane %v1684, 2
  %v1686 = vmax.f32 %v1684, %v1685
  %v1687 = vrot.slane %v1686, 1
  %v1688 = vmax.f32 %v1686, %v1687
  %v1689 = vld [vmem:[%s5] sm:$0xff]
  %v1690 = vld [vmem:[%s5 + $0x8] sm:$0xff]
  %v1691 = vld [vmem:[%s5 + $0x10] sm:$0xff]
  %v1692 = vld [vmem:[%s6] sm:$0x1]
  %v1694 = vlaneseq
  %v1695 = vshrl.u32 %v1694, 7
  %v1696 = vsub.s32 0, %v1695
  %v1697 = vrot.slane %v1692, %v1696
  %vm1707 = vcmask 1041409
  %v1708 = vsel %vm1707, %v1634, %v1625
  %vm1709 = vcmask 1042434
  %v1710 = vsel %vm1709, %v1643, %v1708
  %vm1711 = vcmask 1043459
  %v1712 = vsel %vm1711, %v1652, %v1710
  %vm1713 = vcmask 1044484
  %v1714 = vsel %vm1713, %v1661, %v1712
  %vm1715 = vcmask 1045509
  %v1716 = vsel %vm1715, %v1670, %v1714
  %vm1717 = vcmask 1046534
  %v1718 = vsel %vm1717, %v1679, %v1716
  %vm1719 = vcmask 1047559
  %v1720 = vsel %vm1719, %v1688, %v1718
  %v1721 = vsel %vm1615, %v1720, 0
  %1723 = vmatprep.subr.mxu0 0.0
  %1724 = vmatpush1.msra.mxu0 0.0
  %1725 = vmatprep.subr.mxu0 0.0
  %1726 = vmatpush1.msra.mxu0 0.0
  %1727 = vmatprep.subr.mxu0 0.0
  %1728 = vmatpush1.msra.mxu0 0.0
  %1729 = vmatprep.subr.mxu0 0.0
  %1730 = vmatpush1.msra.mxu0 0.0
  %1731 = vmatprep.subr.mxu0 0.0
  %1732 = vmatpush1.msra.mxu0 0.0
  %1733 = vmatprep.subr.mxu0 0.0
  %1734 = vmatpush1.msra.mxu0 0.0
  %1735 = vmatprep.subr.mxu0 0.0
  %1736 = vmatpush1.msra.mxu0 0.0
  %1737 = vmatprep.subr.mxu0 0.0
  %1738 = vmatpush1.msra.mxu0 0.0
  %1739 = vmatprep.subr.mxu0 0.0
  %1740 = vmatpush1.msra.mxu0 0.0
  %1741 = vmatprep.subr.mxu0 0.0
  %1742 = vmatpush1.msra.mxu0 0.0
  %1743 = vmatprep.subr.mxu0 0.0
  %1744 = vmatpush1.msra.mxu0 0.0
  %1745 = vmatprep.subr.mxu0 0.0
  %1746 = vmatpush1.msra.mxu0 0.0
  %1747 = vmatprep.subr.mxu0 0.0
  %1748 = vmatpush1.msra.mxu0 0.0
  %1749 = vmatprep.subr.mxu0 0.0
  %1750 = vmatpush1.msra.mxu0 %v1691
  %1751 = vmatprep.subr.mxu0 0.0
  %1752 = vmatpush1.msra.mxu0 %v1690
  %1753 = vmatprep.subr.mxu0 0.0
  %1754 = vmatpush1.msra.mxu0 %v1689
  %1755 = vmatprep.subr.mxu0 0.0
  %1756 = vmatpush2.msra.mxu0 0.0
  %1757 = vmatprep.subr.mxu0 0.0
  %1758 = vmatpush2.msra.mxu0 0.0
  %1759 = vmatprep.subr.mxu0 0.0
  %1760 = vmatpush2.msra.mxu0 0.0
  %1761 = vmatprep.subr.mxu0 0.0
  %1762 = vmatpush2.msra.mxu0 0.0
  %1763 = vmatprep.subr.mxu0 0.0
  %1764 = vmatpush2.msra.mxu0 0.0
  %1765 = vmatprep.subr.mxu0 0.0
  %1766 = vmatpush2.msra.mxu0 0.0
  %1767 = vmatprep.subr.mxu0 0.0
  %1768 = vmatpush2.msra.mxu0 0.0
  %1769 = vmatprep.subr.mxu0 0.0
  %1770 = vmatpush2.msra.mxu0 0.0
  %1771 = vmatprep.subr.mxu0 0.0
  %1772 = vmatpush2.msra.mxu0 0.0
  %1773 = vmatprep.subr.mxu0 0.0
  %1774 = vmatpush2.msra.mxu0 0.0
  %1775 = vmatprep.subr.mxu0 0.0
  %1776 = vmatpush2.msra.mxu0 0.0
  %1777 = vmatprep.subr.mxu0 0.0
  %1778 = vmatpush2.msra.mxu0 0.0
  %1779 = vmatprep.subr.mxu0 0.0
  %1780 = vmatpush2.msra.mxu0 0.0
  %1781 = vmatprep.subr.mxu0 0.0
  %1782 = vmatpush2.msra.mxu0 0.0
  %1783 = vmatprep.subr.mxu0 0.0
  %1784 = vmatpush2.msra.mxu0 0.0
  %1785 = vmatprep.subr.mxu0 0.0
  %1786 = vmatpush2.msra.mxu0 0.0
  %1787 = vmatprep.mubr.f32.mxu0 0.0
  %1788 = vmatmul.mubr.f32.gmra.mxu0 %v1721
  %v1789 = vpop.f32.mrf.mxu0
  %v1790 = vadd.f32 %v1697, %v1789
  %v1791 = vpop.f32.mrf.mxu0
  %1792 = vdwg.mxu0
  %vm1793 = vcmask 31744
  %v1794 = vsel %vm1793, %v1790, -inf
  %1795 = vmax.xlane.f32.xlu0 %v1794
  %v1796 = vpop.xlane.xlu0 %1795
  %v1797 = vsub.f32 %v1790, %v1796
  %v1798 = vmul.f32 %v1797, 1.442695
  %v1799 = vpow.pop %v1798
  %v1800 = vsel %vm1793, %v1799, 0.0
  %1801 = vadd.xlane.f32.xlu0 %v1800
  %v1802 = vpop.xlane.xlu0 %1801
  %v1803 = vrcp.pop %v1802
  %v1804 = vmul.f32 %v1799, %v1803
  %v1805 = vsel %vm1793, %v1804, -inf
  %1806 = vmax.xlane.f32.xlu0 %v1805
  %v1807 = vpop.xlane.xlu0 %1806
  %vm1808 = vcmp.ge.f32.partialorder %v1804, %v1807
  %v1809 = vsel %vm1808, %v84, 4
  %v1810 = vsel %vm1793, %v1809, 2147483647
  %v1811 = vand.u32 %v1810, 65535
  %v1812 = vshra.s32 %v1810, 16
  %v1813 = vcvt.s32.f32 %v1811
  %v1814 = vcvt.s32.f32 %v1812
  %1815 = vmin.xlane.f32.xlu0 %v1814
  %v1816 = vpop.xlane.xlu0 %1815
  %vm1817 = vcmp.eq.f32.partialorder %v1814, %v1816
  %v1818 = vsel %vm1817, %v1813, inf
  %1819 = vmin.xlane.f32.xlu0 %v1818
  %v1820 = vpop.xlane.xlu0 %1819
  %v1821 = vcvt.f32.s32 %v1820
  %v1822 = vcvt.f32.s32 %v1816
  %v1823 = vshll.u32 %v1822, 16
  %v1824 = vadd.s32 %v1823, %v1821
  %v1825 = vcvt.s32.f32 %v1824
  %v1826 = vsel %vm1793, %v1804, %v1825
  %vm1827 = vcmask 39936
  %v1828 = vsel %vm1827, %v1826, 0.0
  %vm1829 = vcmask 64512
  %1830 = vst.msk [vmem:[%s7] sm:$0xff] %vm1829, %v1828
  // Predicated region
  $region30: #{cnn_text_classifier.1} parent=0 // pred_check
    _
  $region31: #{cnn_text_classifier.1} parent=0 // pred_check_branch
    %1832 = sbr.rel (0) target = $region33
  $region32: #{cnn_text_classifier.1} parent=0 // pred_region
    _
  $region33: #{cnn_text_classifier.1} parent=0 // pred_fallthru
    _
  // Predicated region
  $region34: #{cnn_text_classifier.1} parent=0 // pred_check
    _
  $region35: #{cnn_text_classifier.1} parent=0 // pred_check_branch
    %1834 = sbr.rel (0) target = $region37
  $region36: #{cnn_text_classifier.1} parent=0 // pred_region
    _
  $region37: #{cnn_text_classifier.1} parent=0 // pred_fallthru
    _

</llo_original>
